<compile_context>
chip_gen: v5e
topology: v5e:2x2
jax: 0.10.0
libtpu: 0.0.40
codegen_flags: <defaults>
</compile_context>

<pallas_src>
import jax
import jax.numpy as jnp
from jax.experimental import pallas as pl
from jax.experimental.pallas import tpu as pltpu


def _copy_slab_kernel(x_ref, o_ref):
    # Each grid step sees one full (C, H, W) slab; the transpose of axes 1/2
    # is realized entirely by the index maps, so this is a straight copy.
    o_ref[...] = x_ref[...]


def transpose_1_2(x):
    """Swap axes 1 and 2 of a 5-D array (B, G, C, H, W) -> (B, C, G, H, W)."""
    B, G, C, H, W = x.shape
    out_shape = jax.ShapeDtypeStruct((B, C, G, H, W), x.dtype)

    # 2 big steps (B*G) instead of 116 tiny ones.
    grid = (B, G)

    # Input block: the whole (C, H, W) slab at [b, g, :, :, :].
    # None => size-1 squeezed dim; index_map still returns an index for it.
    in_spec = pl.BlockSpec(
        (None, None, C, H, W),
        lambda b, g: (b, g, 0, 0, 0),
    )
    # Output block: the whole (C, H, W) slab at [b, :, g, :, :].
    out_spec = pl.BlockSpec(
        (None, C, None, H, W),
        lambda b, g: (b, 0, g, 0, 0),
    )

    return pl.pallas_call(
        _copy_slab_kernel,
        out_shape=out_shape,
        grid_spec=pltpu.PrefetchScalarGridSpec(
            num_scalar_prefetch=0,
            grid=grid,
            in_specs=[in_spec],
            out_specs=out_spec,
        ),
        compiler_params=pltpu.CompilerParams(
            # Every (b, g) step touches a distinct output block -> fully
            # parallel; lets v7x's 2 TensorCores split the work.
            dimension_semantics=("parallel", "parallel"),
        ),
    )(x)


if __name__ == "__main__":
    key = jax.random.PRNGKey(0)
    # Same shape as the PyTorch module's input: [1, 2, 58, 28, 28]
    x47 = jax.random.normal(key, (1, 2, 58, 28, 28), dtype=jnp.float32)

    x48 = transpose_1_2(x47)
    jax.block_until_ready(x48)

    # Verify against the plain-JAX reference of torch.transpose(x, 1, 2)
    ref = jnp.swapaxes(x47, 1, 2)
    assert x48.shape == (1, 58, 2, 28, 28), x48.shape
    assert x48.dtype == x47.dtype
    assert jnp.array_equal(x48, ref), "mismatch vs reference transpose"

    print("KERNEL_OK")
</pallas_src>

<mosaic_0001>
module attributes {stable_mosaic.version = 11 : i64} {
  func.func @_copy_slab_kernel(%arg0: i32, %arg1: i32, %arg2: memref<1x1x58x28x28xf32, #tpu.memory_space<vmem>>, %arg3: memref<1x58x1x28x28xf32, #tpu.memory_space<vmem>>) attributes {dimension_semantics = [#tpu.dimension_semantics<parallel>, #tpu.dimension_semantics<parallel>], iteration_bounds = array<i64: 1, 2>, scalar_prefetch = 0 : i64, scratch_operands = 0 : i64, tpu.core_type = #tpu.core_type<tc>, window_params = [{transform_indices = @transform_0, window_bounds = array<i64: 1, 1, 58, 28, 28>}, {transform_indices = @transform_1, window_bounds = array<i64: 1, 58, 1, 28, 28>}]} {
    %c0 = arith.constant 0 : index
    %c0_0 = arith.constant 0 : index
    %c0_1 = arith.constant 0 : index
    %c0_2 = arith.constant 0 : index
    %c0_3 = arith.constant 0 : index
    %0 = vector.load %arg2[%c0, %c0_0, %c0_1, %c0_2, %c0_3] : memref<1x1x58x28x28xf32, #tpu.memory_space<vmem>>, vector<1x1x58x28x28xf32>
    %1 = vector.shape_cast %0 : vector<1x1x58x28x28xf32> to vector<58x28x28xf32>
    %c0_4 = arith.constant 0 : index
    %c0_5 = arith.constant 0 : index
    %c0_6 = arith.constant 0 : index
    %c0_7 = arith.constant 0 : index
    %c0_8 = arith.constant 0 : index
    %2 = vector.load %arg3[%c0_4, %c0_5, %c0_6, %c0_7, %c0_8] : memref<1x58x1x28x28xf32, #tpu.memory_space<vmem>>, vector<1x58x1x28x28xf32>
    %3 = vector.shape_cast %2 : vector<1x58x1x28x28xf32> to vector<58x28x28xf32>
    %4 = vector.shape_cast %1 : vector<58x28x28xf32> to vector<1x58x1x28x28xf32>
    tpu.vector_store %arg3[%c0_4, %c0_5, %c0_6, %c0_7, %c0_8], %4 {strides = array<i32>} : memref<1x58x1x28x28xf32, #tpu.memory_space<vmem>>, vector<1x58x1x28x28xf32>,
    return
  }
  func.func @transform_0(%arg0: i32, %arg1: i32) -> (i32, i32, i32, i32, i32) {
    %c0_i32 = arith.constant 0 : i32
    %c0_i32_0 = arith.constant 0 : i32
    %c0_i32_1 = arith.constant 0 : i32
    %c0_i32_2 = arith.constant 0 : i32
    return %arg0, %arg1, %c0_i32, %c0_i32_0, %c0_i32_1 : i32, i32, i32, i32, i32
  }
  func.func @transform_1(%arg0: i32, %arg1: i32) -> (i32, i32, i32, i32, i32) {
    %c0_i32 = arith.constant 0 : i32
    %c0_i32_0 = arith.constant 0 : i32
    %c0_i32_1 = arith.constant 0 : i32
    %c0_i32_2 = arith.constant 0 : i32
    return %arg0, %c0_i32, %arg1, %c0_i32_0, %c0_i32_1 : i32, i32, i32, i32, i32
  }
}

</mosaic_0001>

<llo_original>
// kernel: tpu_custom_call.1
$region0: #{tpu_custom_call.1}
  #allocation0 [shape = 'u32[]', space=smem, size = 0x4, offset = 0x4, fixed_abs, tag = 'smem constant byte address 0x4 - core index']
  #allocation1 [shape = 'u32[72,128]{1,0:T(1,128)}', space=vmem, size = 0x9000, scoped, tag = 'internal scratch']
  %s0 = inlined_call_operand.vmem [shape: f32[1,2,58,28,28], index: 0, kind: input, shape index: {}]
  %s1 = inlined_call_operand.vmem [shape: f32[1,58,2,28,28], index: 1, kind: output, shape index: {}]
  %s2 = sld [smem:[#allocation0]]
  $region71: #{tpu_custom_call.1} parent=0
    _
  %s4 = ssub.s32 1, %s2
  %s5 = scalar_select 0, %s4, %s2
  $region1: #{tpu_custom_call.1} parent=0
    #allocation2 [shape = 'u8[1900544]{0}', space=vmem, size = 0x1d0000, scoped, tag = 'output window, operand 0']
    loop: start=0, step=1, limit=4
    $region2: #{tpu_custom_call.1} parent=1 // loop_pre_header
      _
    $region3: #{tpu_custom_call.1} parent=1 // loop_header
      %s7 = sphi 0, %s11
      %p8 = scmp.ge.s32.totalorder %s7, 4
      %s14 = sphi 0, %s26
      %s15 = sphi 0, %s22
      %s16 = sphi 0, %s14
      %s17 = sphi 0, %s15
      %s18 = sphi 0, %s16
      %s19 = sphi 0, %s17
      %s31 = sphi 0, %s33
      %s34 = sphi 0, %s31
      %s35 = sphi 0, %s34
      %s51 = sphi 0, %s35
      %s59 = sphi 0, %s61
      %s62 = sphi 0, %s59
      %s63 = sphi 0, %s62
      %s79 = sphi 0, %s63
    $region4: #{tpu_custom_call.1} parent=1 // loop_header_branch
      %10 = sbr.rel (%p8) target = $region8
    $region5: #{tpu_custom_call.1} parent=1 // loop_body
      %s12 = ssub.s32 %s7, 1
      %s13 = ssub.s32 %s7, 2
      %s20 = sadd.s32 1, %s15
      %p21 = scmp.ge.s32.totalorder %s20, 2
      %s22 = scalar_select %p21, 0, %s20
      %s23 = sadd.s32 1, %s14
      %s24 = scalar_select %p21, %s23, %s14
      %p25 = scmp.ge.s32.totalorder %s24, 1
      %s26 = scalar_select %p25, 0, %s24
      %s27 = ssub.s32 %s14, %s26
      %s28 = ssub.s32 %s15, %s22
      %s29 = sor.u32 %s27, %s28
      %p30 = scmp.eq.s32.totalorder %s29, 0
      %s32 = sadd.s32 %s31, 1
      %s33 = scalar_select %p30, %s31, %s32
      %p36 = pneg %p30
      %p37 = scmp.eq.s32.totalorder %s7, 1
      %p38 = por %p36, %p37
      %p39 = scmp.ne.s32.totalorder %s31, %s34
      %p40 = scmp.eq.s32.totalorder %s7, 0
      %p41 = por %p39, %p40
      %p42 = scmp.ne.s32.totalorder %s31, %s34
      %p43 = scmp.eq.s32.totalorder %s12, 1
      %p44 = por %p42, %p43
      %p45 = scmp.ne.s32.totalorder %s34, %s35
      %p46 = scmp.eq.s32.totalorder %s12, 0
      %p47 = por %p45, %p46
      %p48 = scmp.ne.s32.totalorder %s34, %s35
      %p49 = scmp.eq.s32.totalorder %s13, 1
      %p50 = por %p48, %p49
      %p52 = scmp.ne.s32.totalorder %s35, %s51
      %p53 = scmp.eq.s32.totalorder %s13, 0
      %p54 = por %p52, %p53
      %s55 = ssub.s32 %s14, %s26
      %s56 = ssub.s32 %s15, %s22
      %s57 = sor.u32 %s55, %s56
      %p58 = scmp.eq.s32.totalorder %s57, 0
      %s60 = sadd.s32 %s59, 1
      %s61 = scalar_select %p58, %s59, %s60
      %p64 = pneg %p58
      %p65 = scmp.eq.s32.totalorder %s7, 1
      %p66 = por %p64, %p65
      %p67 = scmp.ne.s32.totalorder %s59, %s62
      %p68 = scmp.eq.s32.totalorder %s7, 0
      %p69 = por %p67, %p68
      %p70 = scmp.ne.s32.totalorder %s59, %s62
      %p71 = scmp.eq.s32.totalorder %s12, 1
      %p72 = por %p70, %p71
      %p73 = scmp.ne.s32.totalorder %s62, %s63
      %p74 = scmp.eq.s32.totalorder %s12, 0
      %p75 = por %p73, %p74
      %p76 = scmp.ne.s32.totalorder %s62, %s63
      %p77 = scmp.eq.s32.totalorder %s13, 1
      %p78 = por %p76, %p77
      %p80 = scmp.ne.s32.totalorder %s63, %s79
      %p81 = scmp.eq.s32.totalorder %s13, 0
      %p82 = por %p80, %p81
      %p83 = scmp.le.s32.totalorder 1, %s7
      %p84 = scmp.lt.s32.totalorder %s7, 3
      %p85 = pnand %p83, %p84
      %p86 = pneg %p85
      // Predicated region
      $region9: #{tpu_custom_call.1} parent=5 // pred_check
        _
      $region10: #{tpu_custom_call.1} parent=5 // pred_check_branch
        %88 = sbr.rel (%p85) target = $region12
      $region11: #{tpu_custom_call.1} parent=5 // pred_region
        %s89 = ssub.s32 %s7, 1
      $region12: #{tpu_custom_call.1} parent=5 // pred_fallthru
        _
      %p90 = scmp.lt.s32.totalorder %s7, 2
      // Predicated region
      $region13: #{tpu_custom_call.1} parent=5 // pred_check
        %p91 = pneg %p90
      $region14: #{tpu_custom_call.1} parent=5 // pred_check_branch
        %93 = sbr.rel (%p91) target = $region16
      $region15: #{tpu_custom_call.1} parent=5 // pred_region
        // Predicated region
        $region17: #{tpu_custom_call.1} parent=15 // pred_check
          %p94 = pneg %p41
        $region18: #{tpu_custom_call.1} parent=15 // pred_check_branch
          %96 = sbr.rel (%p94) target = $region20
        $region19: #{tpu_custom_call.1} parent=15 // pred_region
          %p97 = scmp.lt.s32.totalorder %s14, 0
          %s98 = scalar_select %p97, %s14, 0
          %p99 = scmp.lt.s32.totalorder %s15, 1
          %s100 = scalar_select %p99, %s15, 1
          %s101 = smul.addr %s100, 232
          %s102 = smul.addr %s98, 464
          %s103 = sadd.s32 %s101, %s102
          %s104 = smul.addr %s103, 8
          %s105 = scalar_lea.vmem %s0, %s104
        $region20: #{tpu_custom_call.1} parent=15 // pred_fallthru
          _
      $region16: #{tpu_custom_call.1} parent=5 // pred_fallthru
        _
      %p106 = scmp.le.s32.totalorder 1, %s7
      %p107 = scmp.lt.s32.totalorder %s7, 3
      %p108 = pnand %p106, %p107
      %p109 = pneg %p108
      // Predicated region
      $region21: #{tpu_custom_call.1} parent=5 // pred_check
        _
      $region22: #{tpu_custom_call.1} parent=5 // pred_check_branch
        %111 = sbr.rel (%p108) target = $region24
      $region23: #{tpu_custom_call.1} parent=5 // pred_region
        %s112 = ssub.s32 %s7, 1
        %p113 = scmp.lt.s32.totalorder %s16, 0
        %s114 = scalar_select %p113, %s16, 0
        %p115 = scmp.lt.s32.totalorder %s17, 1
        %s116 = scalar_select %p115, %s17, 1
        %s117 = smul.addr %s116, 232
        %s118 = smul.addr %s114, 464
        %s119 = sadd.s32 %s117, %s118
        %s120 = smul.addr %s119, 8
        %s121 = scalar_lea.vmem %s0, %s120
        %p122 = pneg %p47
        %p123 = pneg %p44
        %p124 = pneg %p75
        %p125 = pneg %p72
        %s126 = sand.u32 %s62, 1
        %s127 = sand.u32 %s62, 1
        %s128 = smul.addr %s127, 1856
        %s129 = scalar_lea.vmem [#allocation2], %s128
        %p130 = scmp.lt.s32.totalorder %s16, 0
        %s131 = scalar_select %p130, %s16, 0
        %p132 = scmp.lt.s32.totalorder %s17, 1
        %s133 = scalar_select %p132, %s17, 1
        %s134 = smul.addr %s133, 232
        %s135 = smul.addr %s131, 464
        %s136 = sadd.s32 %s134, %s135
        %s137 = smul.addr %s136, 8
        %s138 = scalar_lea.vmem %s0, %s137
        %v139 = vld [vmem:[%s138] sm:$0xff]
        %v140 = vld [vmem:[%s138 + $0x8] sm:$0xff]
        %v141 = vld [vmem:[%s138 + $0x10] sm:$0xff]
        %v142 = vld [vmem:[%s138 + $0x18] sm:$0xf]
        %v143 = vld [vmem:[%s138 + $0x20] sm:$0xff]
        %v144 = vld [vmem:[%s138 + $0x28] sm:$0xff]
        %v145 = vld [vmem:[%s138 + $0x30] sm:$0xff]
        %v146 = vld [vmem:[%s138 + $0x38] sm:$0xf]
        %v147 = vld [vmem:[%s138 + $0x40] sm:$0xff]
        %v148 = vld [vmem:[%s138 + $0x48] sm:$0xff]
        %v149 = vld [vmem:[%s138 + $0x50] sm:$0xff]
        %v150 = vld [vmem:[%s138 + $0x58] sm:$0xf]
        %v151 = vld [vmem:[%s138 + $0x60] sm:$0xff]
        %v152 = vld [vmem:[%s138 + $0x68] sm:$0xff]
        %v153 = vld [vmem:[%s138 + $0x70] sm:$0xff]
        %v154 = vld [vmem:[%s138 + $0x78] sm:$0xf]
        %v155 = vld [vmem:[%s138 + $0x80] sm:$0xff]
        %v156 = vld [vmem:[%s138 + $0x88] sm:$0xff]
        %v157 = vld [vmem:[%s138 + $0x90] sm:$0xff]
        %v158 = vld [vmem:[%s138 + $0x98] sm:$0xf]
        %v159 = vld [vmem:[%s138 + $0xa0] sm:$0xff]
        %v160 = vld [vmem:[%s138 + $0xa8] sm:$0xff]
        %v161 = vld [vmem:[%s138 + $0xb0] sm:$0xff]
        %v162 = vld [vmem:[%s138 + $0xb8] sm:$0xf]
        %v163 = vld [vmem:[%s138 + $0xc0] sm:$0xff]
        %v164 = vld [vmem:[%s138 + $0xc8] sm:$0xff]
        %v165 = vld [vmem:[%s138 + $0xd0] sm:$0xff]
        %v166 = vld [vmem:[%s138 + $0xd8] sm:$0xf]
        %v167 = vld [vmem:[%s138 + $0xe0] sm:$0xff]
        %v168 = vld [vmem:[%s138 + $0xe8] sm:$0xff]
        %v169 = vld [vmem:[%s138 + $0xf0] sm:$0xff]
        %v170 = vld [vmem:[%s138 + $0xf8] sm:$0xf]
        %v171 = vld [vmem:[%s138 + $0x100] sm:$0xff]
        %v172 = vld [vmem:[%s138 + $0x108] sm:$0xff]
        %v173 = vld [vmem:[%s138 + $0x110] sm:$0xff]
        %v174 = vld [vmem:[%s138 + $0x118] sm:$0xf]
        %v175 = vld [vmem:[%s138 + $0x120] sm:$0xff]
        %v176 = vld [vmem:[%s138 + $0x128] sm:$0xff]
        %v177 = vld [vmem:[%s138 + $0x130] sm:$0xff]
        %v178 = vld [vmem:[%s138 + $0x138] sm:$0xf]
        %v179 = vld [vmem:[%s138 + $0x140] sm:$0xff]
        %v180 = vld [vmem:[%s138 + $0x148] sm:$0xff]
        %v181 = vld [vmem:[%s138 + $0x150] sm:$0xff]
        %v182 = vld [vmem:[%s138 + $0x158] sm:$0xf]
        %v183 = vld [vmem:[%s138 + $0x160] sm:$0xff]
        %v184 = vld [vmem:[%s138 + $0x168] sm:$0xff]
        %v185 = vld [vmem:[%s138 + $0x170] sm:$0xff]
        %v186 = vld [vmem:[%s138 + $0x178] sm:$0xf]
        %v187 = vld [vmem:[%s138 + $0x180] sm:$0xff]
        %v188 = vld [vmem:[%s138 + $0x188] sm:$0xff]
        %v189 = vld [vmem:[%s138 + $0x190] sm:$0xff]
        %v190 = vld [vmem:[%s138 + $0x198] sm:$0xf]
        %v191 = vld [vmem:[%s138 + $0x1a0] sm:$0xff]
        %v192 = vld [vmem:[%s138 + $0x1a8] sm:$0xff]
        %v193 = vld [vmem:[%s138 + $0x1b0] sm:$0xff]
        %v194 = vld [vmem:[%s138 + $0x1b8] sm:$0xf]
        %v195 = vld [vmem:[%s138 + $0x1c0] sm:$0xff]
        %v196 = vld [vmem:[%s138 + $0x1c8] sm:$0xff]
        %v197 = vld [vmem:[%s138 + $0x1d0] sm:$0xff]
        %v198 = vld [vmem:[%s138 + $0x1d8] sm:$0xf]
        %v199 = vld [vmem:[%s138 + $0x1e0] sm:$0xff]
        %v200 = vld [vmem:[%s138 + $0x1e8] sm:$0xff]
        %v201 = vld [vmem:[%s138 + $0x1f0] sm:$0xff]
        %v202 = vld [vmem:[%s138 + $0x1f8] sm:$0xf]
        %v203 = vld [vmem:[%s138 + $0x200] sm:$0xff]
        %v204 = vld [vmem:[%s138 + $0x208] sm:$0xff]
        %v205 = vld [vmem:[%s138 + $0x210] sm:$0xff]
        %v206 = vld [vmem:[%s138 + $0x218] sm:$0xf]
        %v207 = vld [vmem:[%s138 + $0x220] sm:$0xff]
        %v208 = vld [vmem:[%s138 + $0x228] sm:$0xff]
        %v209 = vld [vmem:[%s138 + $0x230] sm:$0xff]
        %v210 = vld [vmem:[%s138 + $0x238] sm:$0xf]
        %v211 = vld [vmem:[%s138 + $0x240] sm:$0xff]
        %v212 = vld [vmem:[%s138 + $0x248] sm:$0xff]
        %v213 = vld [vmem:[%s138 + $0x250] sm:$0xff]
        %v214 = vld [vmem:[%s138 + $0x258] sm:$0xf]
        %v215 = vld [vmem:[%s138 + $0x260] sm:$0xff]
        %v216 = vld [vmem:[%s138 + $0x268] sm:$0xff]
        %v217 = vld [vmem:[%s138 + $0x270] sm:$0xff]
        %v218 = vld [vmem:[%s138 + $0x278] sm:$0xf]
        %v219 = vld [vmem:[%s138 + $0x280] sm:$0xff]
        %v220 = vld [vmem:[%s138 + $0x288] sm:$0xff]
        %v221 = vld [vmem:[%s138 + $0x290] sm:$0xff]
        %v222 = vld [vmem:[%s138 + $0x298] sm:$0xf]
        %v223 = vld [vmem:[%s138 + $0x2a0] sm:$0xff]
        %v224 = vld [vmem:[%s138 + $0x2a8] sm:$0xff]
        %v225 = vld [vmem:[%s138 + $0x2b0] sm:$0xff]
        %v226 = vld [vmem:[%s138 + $0x2b8] sm:$0xf]
        %v227 = vld [vmem:[%s138 + $0x2c0] sm:$0xff]
        %v228 = vld [vmem:[%s138 + $0x2c8] sm:$0xff]
        %v229 = vld [vmem:[%s138 + $0x2d0] sm:$0xff]
        %v230 = vld [vmem:[%s138 + $0x2d8] sm:$0xf]
        %v231 = vld [vmem:[%s138 + $0x2e0] sm:$0xff]
        %v232 = vld [vmem:[%s138 + $0x2e8] sm:$0xff]
        %v233 = vld [vmem:[%s138 + $0x2f0] sm:$0xff]
        %v234 = vld [vmem:[%s138 + $0x2f8] sm:$0xf]
        %v235 = vld [vmem:[%s138 + $0x300] sm:$0xff]
        %v236 = vld [vmem:[%s138 + $0x308] sm:$0xff]
        %v237 = vld [vmem:[%s138 + $0x310] sm:$0xff]
        %v238 = vld [vmem:[%s138 + $0x318] sm:$0xf]
        %v239 = vld [vmem:[%s138 + $0x320] sm:$0xff]
        %v240 = vld [vmem:[%s138 + $0x328] sm:$0xff]
        %v241 = vld [vmem:[%s138 + $0x330] sm:$0xff]
        %v242 = vld [vmem:[%s138 + $0x338] sm:$0xf]
        %v243 = vld [vmem:[%s138 + $0x340] sm:$0xff]
        %v244 = vld [vmem:[%s138 + $0x348] sm:$0xff]
        %v245 = vld [vmem:[%s138 + $0x350] sm:$0xff]
        %v246 = vld [vmem:[%s138 + $0x358] sm:$0xf]
        %v247 = vld [vmem:[%s138 + $0x360] sm:$0xff]
        %v248 = vld [vmem:[%s138 + $0x368] sm:$0xff]
        %v249 = vld [vmem:[%s138 + $0x370] sm:$0xff]
        %v250 = vld [vmem:[%s138 + $0x378] sm:$0xf]
        %v251 = vld [vmem:[%s138 + $0x380] sm:$0xff]
        %v252 = vld [vmem:[%s138 + $0x388] sm:$0xff]
        %v253 = vld [vmem:[%s138 + $0x390] sm:$0xff]
        %v254 = vld [vmem:[%s138 + $0x398] sm:$0xf]
        %v255 = vld [vmem:[%s138 + $0x3a0] sm:$0xff]
        %v256 = vld [vmem:[%s138 + $0x3a8] sm:$0xff]
        %v257 = vld [vmem:[%s138 + $0x3b0] sm:$0xff]
        %v258 = vld [vmem:[%s138 + $0x3b8] sm:$0xf]
        %v259 = vld [vmem:[%s138 + $0x3c0] sm:$0xff]
        %v260 = vld [vmem:[%s138 + $0x3c8] sm:$0xff]
        %v261 = vld [vmem:[%s138 + $0x3d0] sm:$0xff]
        %v262 = vld [vmem:[%s138 + $0x3d8] sm:$0xf]
        %v263 = vld [vmem:[%s138 + $0x3e0] sm:$0xff]
        %v264 = vld [vmem:[%s138 + $0x3e8] sm:$0xff]
        %v265 = vld [vmem:[%s138 + $0x3f0] sm:$0xff]
        %v266 = vld [vmem:[%s138 + $0x3f8] sm:$0xf]
        %v267 = vld [vmem:[%s138 + $0x400] sm:$0xff]
        %v268 = vld [vmem:[%s138 + $0x408] sm:$0xff]
        %v269 = vld [vmem:[%s138 + $0x410] sm:$0xff]
        %v270 = vld [vmem:[%s138 + $0x418] sm:$0xf]
        %v271 = vld [vmem:[%s138 + $0x420] sm:$0xff]
        %v272 = vld [vmem:[%s138 + $0x428] sm:$0xff]
        %v273 = vld [vmem:[%s138 + $0x430] sm:$0xff]
        %v274 = vld [vmem:[%s138 + $0x438] sm:$0xf]
        %v275 = vld [vmem:[%s138 + $0x440] sm:$0xff]
        %v276 = vld [vmem:[%s138 + $0x448] sm:$0xff]
        %v277 = vld [vmem:[%s138 + $0x450] sm:$0xff]
        %v278 = vld [vmem:[%s138 + $0x458] sm:$0xf]
        %v279 = vld [vmem:[%s138 + $0x460] sm:$0xff]
        %v280 = vld [vmem:[%s138 + $0x468] sm:$0xff]
        %v281 = vld [vmem:[%s138 + $0x470] sm:$0xff]
        %v282 = vld [vmem:[%s138 + $0x478] sm:$0xf]
        %v283 = vld [vmem:[%s138 + $0x480] sm:$0xff]
        %v284 = vld [vmem:[%s138 + $0x488] sm:$0xff]
        %v285 = vld [vmem:[%s138 + $0x490] sm:$0xff]
        %v286 = vld [vmem:[%s138 + $0x498] sm:$0xf]
        %v287 = vld [vmem:[%s138 + $0x4a0] sm:$0xff]
        %v288 = vld [vmem:[%s138 + $0x4a8] sm:$0xff]
        %v289 = vld [vmem:[%s138 + $0x4b0] sm:$0xff]
        %v290 = vld [vmem:[%s138 + $0x4b8] sm:$0xf]
        %v291 = vld [vmem:[%s138 + $0x4c0] sm:$0xff]
        %v292 = vld [vmem:[%s138 + $0x4c8] sm:$0xff]
        %v293 = vld [vmem:[%s138 + $0x4d0] sm:$0xff]
        %v294 = vld [vmem:[%s138 + $0x4d8] sm:$0xf]
        %v295 = vld [vmem:[%s138 + $0x4e0] sm:$0xff]
        %v296 = vld [vmem:[%s138 + $0x4e8] sm:$0xff]
        %v297 = vld [vmem:[%s138 + $0x4f0] sm:$0xff]
        %v298 = vld [vmem:[%s138 + $0x4f8] sm:$0xf]
        %v299 = vld [vmem:[%s138 + $0x500] sm:$0xff]
        %v300 = vld [vmem:[%s138 + $0x508] sm:$0xff]
        %v301 = vld [vmem:[%s138 + $0x510] sm:$0xff]
        %v302 = vld [vmem:[%s138 + $0x518] sm:$0xf]
        %v303 = vld [vmem:[%s138 + $0x520] sm:$0xff]
        %v304 = vld [vmem:[%s138 + $0x528] sm:$0xff]
        %v305 = vld [vmem:[%s138 + $0x530] sm:$0xff]
        %v306 = vld [vmem:[%s138 + $0x538] sm:$0xf]
        %v307 = vld [vmem:[%s138 + $0x540] sm:$0xff]
        %v308 = vld [vmem:[%s138 + $0x548] sm:$0xff]
        %v309 = vld [vmem:[%s138 + $0x550] sm:$0xff]
        %v310 = vld [vmem:[%s138 + $0x558] sm:$0xf]
        %v311 = vld [vmem:[%s138 + $0x560] sm:$0xff]
        %v312 = vld [vmem:[%s138 + $0x568] sm:$0xff]
        %v313 = vld [vmem:[%s138 + $0x570] sm:$0xff]
        %v314 = vld [vmem:[%s138 + $0x578] sm:$0xf]
        %v315 = vld [vmem:[%s138 + $0x580] sm:$0xff]
        %v316 = vld [vmem:[%s138 + $0x588] sm:$0xff]
        %v317 = vld [vmem:[%s138 + $0x590] sm:$0xff]
        %v318 = vld [vmem:[%s138 + $0x598] sm:$0xf]
        %v319 = vld [vmem:[%s138 + $0x5a0] sm:$0xff]
        %v320 = vld [vmem:[%s138 + $0x5a8] sm:$0xff]
        %v321 = vld [vmem:[%s138 + $0x5b0] sm:$0xff]
        %v322 = vld [vmem:[%s138 + $0x5b8] sm:$0xf]
        %v323 = vld [vmem:[%s138 + $0x5c0] sm:$0xff]
        %v324 = vld [vmem:[%s138 + $0x5c8] sm:$0xff]
        %v325 = vld [vmem:[%s138 + $0x5d0] sm:$0xff]
        %v326 = vld [vmem:[%s138 + $0x5d8] sm:$0xf]
        %v327 = vld [vmem:[%s138 + $0x5e0] sm:$0xff]
        %v328 = vld [vmem:[%s138 + $0x5e8] sm:$0xff]
        %v329 = vld [vmem:[%s138 + $0x5f0] sm:$0xff]
        %v330 = vld [vmem:[%s138 + $0x5f8] sm:$0xf]
        %v331 = vld [vmem:[%s138 + $0x600] sm:$0xff]
        %v332 = vld [vmem:[%s138 + $0x608] sm:$0xff]
        %v333 = vld [vmem:[%s138 + $0x610] sm:$0xff]
        %v334 = vld [vmem:[%s138 + $0x618] sm:$0xf]
        %v335 = vld [vmem:[%s138 + $0x620] sm:$0xff]
        %v336 = vld [vmem:[%s138 + $0x628] sm:$0xff]
        %v337 = vld [vmem:[%s138 + $0x630] sm:$0xff]
        %v338 = vld [vmem:[%s138 + $0x638] sm:$0xf]
        %v339 = vld [vmem:[%s138 + $0x640] sm:$0xff]
        %v340 = vld [vmem:[%s138 + $0x648] sm:$0xff]
        %v341 = vld [vmem:[%s138 + $0x650] sm:$0xff]
        %v342 = vld [vmem:[%s138 + $0x658] sm:$0xf]
        %v343 = vld [vmem:[%s138 + $0x660] sm:$0xff]
        %v344 = vld [vmem:[%s138 + $0x668] sm:$0xff]
        %v345 = vld [vmem:[%s138 + $0x670] sm:$0xff]
        %v346 = vld [vmem:[%s138 + $0x678] sm:$0xf]
        %v347 = vld [vmem:[%s138 + $0x680] sm:$0xff]
        %v348 = vld [vmem:[%s138 + $0x688] sm:$0xff]
        %v349 = vld [vmem:[%s138 + $0x690] sm:$0xff]
        %v350 = vld [vmem:[%s138 + $0x698] sm:$0xf]
        %v351 = vld [vmem:[%s138 + $0x6a0] sm:$0xff]
        %v352 = vld [vmem:[%s138 + $0x6a8] sm:$0xff]
        %v353 = vld [vmem:[%s138 + $0x6b0] sm:$0xff]
        %v354 = vld [vmem:[%s138 + $0x6b8] sm:$0xf]
        %v355 = vld [vmem:[%s138 + $0x6c0] sm:$0xff]
        %v356 = vld [vmem:[%s138 + $0x6c8] sm:$0xff]
        %v357 = vld [vmem:[%s138 + $0x6d0] sm:$0xff]
        %v358 = vld [vmem:[%s138 + $0x6d8] sm:$0xf]
        %v359 = vld [vmem:[%s138 + $0x6e0] sm:$0xff]
        %v360 = vld [vmem:[%s138 + $0x6e8] sm:$0xff]
        %v361 = vld [vmem:[%s138 + $0x6f0] sm:$0xff]
        %v362 = vld [vmem:[%s138 + $0x6f8] sm:$0xf]
        %v363 = vld [vmem:[%s138 + $0x700] sm:$0xff]
        %v364 = vld [vmem:[%s138 + $0x708] sm:$0xff]
        %v365 = vld [vmem:[%s138 + $0x710] sm:$0xff]
        %v366 = vld [vmem:[%s138 + $0x718] sm:$0xf]
        %v367 = vld [vmem:[%s138 + $0x720] sm:$0xff]
        %v368 = vld [vmem:[%s138 + $0x728] sm:$0xff]
        %v369 = vld [vmem:[%s138 + $0x730] sm:$0xff]
        %v370 = vld [vmem:[%s138 + $0x738] sm:$0xf]
        %vm371 = vcmask 228352
        %372 = vst.msk [vmem:[%s129] sm:$0xff] %vm371, %v139
        %373 = vst.msk [vmem:[%s129 + $0x8] sm:$0xff] %vm371, %v140
        %374 = vst.msk [vmem:[%s129 + $0x10] sm:$0xff] %vm371, %v141
        %vm375 = vcmask 224256
        %376 = vst.msk [vmem:[%s129 + $0x18] sm:$0xf] %vm375, %v142
        %377 = vst.msk [vmem:[%s129 + $0x20] sm:$0xff] %vm371, %v143
        %378 = vst.msk [vmem:[%s129 + $0x28] sm:$0xff] %vm371, %v144
        %379 = vst.msk [vmem:[%s129 + $0x30] sm:$0xff] %vm371, %v145
        %380 = vst.msk [vmem:[%s129 + $0x38] sm:$0xf] %vm375, %v146
        %381 = vst.msk [vmem:[%s129 + $0x40] sm:$0xff] %vm371, %v147
        %382 = vst.msk [vmem:[%s129 + $0x48] sm:$0xff] %vm371, %v148
        %383 = vst.msk [vmem:[%s129 + $0x50] sm:$0xff] %vm371, %v149
        %384 = vst.msk [vmem:[%s129 + $0x58] sm:$0xf] %vm375, %v150
        %385 = vst.msk [vmem:[%s129 + $0x60] sm:$0xff] %vm371, %v151
        %386 = vst.msk [vmem:[%s129 + $0x68] sm:$0xff] %vm371, %v152
        %387 = vst.msk [vmem:[%s129 + $0x70] sm:$0xff] %vm371, %v153
        %388 = vst.msk [vmem:[%s129 + $0x78] sm:$0xf] %vm375, %v154
        %389 = vst.msk [vmem:[%s129 + $0x80] sm:$0xff] %vm371, %v155
        %390 = vst.msk [vmem:[%s129 + $0x88] sm:$0xff] %vm371, %v156
        %391 = vst.msk [vmem:[%s129 + $0x90] sm:$0xff] %vm371, %v157
        %392 = vst.msk [vmem:[%s129 + $0x98] sm:$0xf] %vm375, %v158
        %393 = vst.msk [vmem:[%s129 + $0xa0] sm:$0xff] %vm371, %v159
        %394 = vst.msk [vmem:[%s129 + $0xa8] sm:$0xff] %vm371, %v160
        %395 = vst.msk [vmem:[%s129 + $0xb0] sm:$0xff] %vm371, %v161
        %396 = vst.msk [vmem:[%s129 + $0xb8] sm:$0xf] %vm375, %v162
        %397 = vst.msk [vmem:[%s129 + $0xc0] sm:$0xff] %vm371, %v163
        %398 = vst.msk [vmem:[%s129 + $0xc8] sm:$0xff] %vm371, %v164
        %399 = vst.msk [vmem:[%s129 + $0xd0] sm:$0xff] %vm371, %v165
        %400 = vst.msk [vmem:[%s129 + $0xd8] sm:$0xf] %vm375, %v166
        %401 = vst.msk [vmem:[%s129 + $0xe0] sm:$0xff] %vm371, %v167
        %402 = vst.msk [vmem:[%s129 + $0xe8] sm:$0xff] %vm371, %v168
        %403 = vst.msk [vmem:[%s129 + $0xf0] sm:$0xff] %vm371, %v169
        %404 = vst.msk [vmem:[%s129 + $0xf8] sm:$0xf] %vm375, %v170
        %405 = vst.msk [vmem:[%s129 + $0x100] sm:$0xff] %vm371, %v171
        %406 = vst.msk [vmem:[%s129 + $0x108] sm:$0xff] %vm371, %v172
        %407 = vst.msk [vmem:[%s129 + $0x110] sm:$0xff] %vm371, %v173
        %408 = vst.msk [vmem:[%s129 + $0x118] sm:$0xf] %vm375, %v174
        %409 = vst.msk [vmem:[%s129 + $0x120] sm:$0xff] %vm371, %v175
        %410 = vst.msk [vmem:[%s129 + $0x128] sm:$0xff] %vm371, %v176
        %411 = vst.msk [vmem:[%s129 + $0x130] sm:$0xff] %vm371, %v177
        %412 = vst.msk [vmem:[%s129 + $0x138] sm:$0xf] %vm375, %v178
        %413 = vst.msk [vmem:[%s129 + $0x140] sm:$0xff] %vm371, %v179
        %414 = vst.msk [vmem:[%s129 + $0x148] sm:$0xff] %vm371, %v180
        %415 = vst.msk [vmem:[%s129 + $0x150] sm:$0xff] %vm371, %v181
        %416 = vst.msk [vmem:[%s129 + $0x158] sm:$0xf] %vm375, %v182
        %417 = vst.msk [vmem:[%s129 + $0x160] sm:$0xff] %vm371, %v183
        %418 = vst.msk [vmem:[%s129 + $0x168] sm:$0xff] %vm371, %v184
        %419 = vst.msk [vmem:[%s129 + $0x170] sm:$0xff] %vm371, %v185
        %420 = vst.msk [vmem:[%s129 + $0x178] sm:$0xf] %vm375, %v186
        %421 = vst.msk [vmem:[%s129 + $0x180] sm:$0xff] %vm371, %v187
        %422 = vst.msk [vmem:[%s129 + $0x188] sm:$0xff] %vm371, %v188
        %423 = vst.msk [vmem:[%s129 + $0x190] sm:$0xff] %vm371, %v189
        %424 = vst.msk [vmem:[%s129 + $0x198] sm:$0xf] %vm375, %v190
        %425 = vst.msk [vmem:[%s129 + $0x1a0] sm:$0xff] %vm371, %v191
        %426 = vst.msk [vmem:[%s129 + $0x1a8] sm:$0xff] %vm371, %v192
        %427 = vst.msk [vmem:[%s129 + $0x1b0] sm:$0xff] %vm371, %v193
        %428 = vst.msk [vmem:[%s129 + $0x1b8] sm:$0xf] %vm375, %v194
        %429 = vst.msk [vmem:[%s129 + $0x1c0] sm:$0xff] %vm371, %v195
        %430 = vst.msk [vmem:[%s129 + $0x1c8] sm:$0xff] %vm371, %v196
        %431 = vst.msk [vmem:[%s129 + $0x1d0] sm:$0xff] %vm371, %v197
        %432 = vst.msk [vmem:[%s129 + $0x1d8] sm:$0xf] %vm375, %v198
        %433 = vst.msk [vmem:[%s129 + $0x1e0] sm:$0xff] %vm371, %v199
        %434 = vst.msk [vmem:[%s129 + $0x1e8] sm:$0xff] %vm371, %v200
        %435 = vst.msk [vmem:[%s129 + $0x1f0] sm:$0xff] %vm371, %v201
        %436 = vst.msk [vmem:[%s129 + $0x1f8] sm:$0xf] %vm375, %v202
        %437 = vst.msk [vmem:[%s129 + $0x200] sm:$0xff] %vm371, %v203
        %438 = vst.msk [vmem:[%s129 + $0x208] sm:$0xff] %vm371, %v204
        %439 = vst.msk [vmem:[%s129 + $0x210] sm:$0xff] %vm371, %v205
        %440 = vst.msk [vmem:[%s129 + $0x218] sm:$0xf] %vm375, %v206
        %441 = vst.msk [vmem:[%s129 + $0x220] sm:$0xff] %vm371, %v207
        %442 = vst.msk [vmem:[%s129 + $0x228] sm:$0xff] %vm371, %v208
        %443 = vst.msk [vmem:[%s129 + $0x230] sm:$0xff] %vm371, %v209
        %444 = vst.msk [vmem:[%s129 + $0x238] sm:$0xf] %vm375, %v210
        %445 = vst.msk [vmem:[%s129 + $0x240] sm:$0xff] %vm371, %v211
        %446 = vst.msk [vmem:[%s129 + $0x248] sm:$0xff] %vm371, %v212
        %447 = vst.msk [vmem:[%s129 + $0x250] sm:$0xff] %vm371, %v213
        %448 = vst.msk [vmem:[%s129 + $0x258] sm:$0xf] %vm375, %v214
        %449 = vst.msk [vmem:[%s129 + $0x260] sm:$0xff] %vm371, %v215
        %450 = vst.msk [vmem:[%s129 + $0x268] sm:$0xff] %vm371, %v216
        %451 = vst.msk [vmem:[%s129 + $0x270] sm:$0xff] %vm371, %v217
        %452 = vst.msk [vmem:[%s129 + $0x278] sm:$0xf] %vm375, %v218
        %453 = vst.msk [vmem:[%s129 + $0x280] sm:$0xff] %vm371, %v219
        %454 = vst.msk [vmem:[%s129 + $0x288] sm:$0xff] %vm371, %v220
        %455 = vst.msk [vmem:[%s129 + $0x290] sm:$0xff] %vm371, %v221
        %456 = vst.msk [vmem:[%s129 + $0x298] sm:$0xf] %vm375, %v222
        %457 = vst.msk [vmem:[%s129 + $0x2a0] sm:$0xff] %vm371, %v223
        %458 = vst.msk [vmem:[%s129 + $0x2a8] sm:$0xff] %vm371, %v224
        %459 = vst.msk [vmem:[%s129 + $0x2b0] sm:$0xff] %vm371, %v225
        %460 = vst.msk [vmem:[%s129 + $0x2b8] sm:$0xf] %vm375, %v226
        %461 = vst.msk [vmem:[%s129 + $0x2c0] sm:$0xff] %vm371, %v227
        %462 = vst.msk [vmem:[%s129 + $0x2c8] sm:$0xff] %vm371, %v228
        %463 = vst.msk [vmem:[%s129 + $0x2d0] sm:$0xff] %vm371, %v229
        %464 = vst.msk [vmem:[%s129 + $0x2d8] sm:$0xf] %vm375, %v230
        %465 = vst.msk [vmem:[%s129 + $0x2e0] sm:$0xff] %vm371, %v231
        %466 = vst.msk [vmem:[%s129 + $0x2e8] sm:$0xff] %vm371, %v232
        %467 = vst.msk [vmem:[%s129 + $0x2f0] sm:$0xff] %vm371, %v233
        %468 = vst.msk [vmem:[%s129 + $0x2f8] sm:$0xf] %vm375, %v234
        %469 = vst.msk [vmem:[%s129 + $0x300] sm:$0xff] %vm371, %v235
        %470 = vst.msk [vmem:[%s129 + $0x308] sm:$0xff] %vm371, %v236
        %471 = vst.msk [vmem:[%s129 + $0x310] sm:$0xff] %vm371, %v237
        %472 = vst.msk [vmem:[%s129 + $0x318] sm:$0xf] %vm375, %v238
        %473 = vst.msk [vmem:[%s129 + $0x320] sm:$0xff] %vm371, %v239
        %474 = vst.msk [vmem:[%s129 + $0x328] sm:$0xff] %vm371, %v240
        %475 = vst.msk [vmem:[%s129 + $0x330] sm:$0xff] %vm371, %v241
        %476 = vst.msk [vmem:[%s129 + $0x338] sm:$0xf] %vm375, %v242
        %477 = vst.msk [vmem:[%s129 + $0x340] sm:$0xff] %vm371, %v243
        %478 = vst.msk [vmem:[%s129 + $0x348] sm:$0xff] %vm371, %v244
        %479 = vst.msk [vmem:[%s129 + $0x350] sm:$0xff] %vm371, %v245
        %480 = vst.msk [vmem:[%s129 + $0x358] sm:$0xf] %vm375, %v246
        %481 = vst.msk [vmem:[%s129 + $0x360] sm:$0xff] %vm371, %v247
        %482 = vst.msk [vmem:[%s129 + $0x368] sm:$0xff] %vm371, %v248
        %483 = vst.msk [vmem:[%s129 + $0x370] sm:$0xff] %vm371, %v249
        %484 = vst.msk [vmem:[%s129 + $0x378] sm:$0xf] %vm375, %v250
        %485 = vst.msk [vmem:[%s129 + $0x380] sm:$0xff] %vm371, %v251
        %486 = vst.msk [vmem:[%s129 + $0x388] sm:$0xff] %vm371, %v252
        %487 = vst.msk [vmem:[%s129 + $0x390] sm:$0xff] %vm371, %v253
        %488 = vst.msk [vmem:[%s129 + $0x398] sm:$0xf] %vm375, %v254
        %489 = vst.msk [vmem:[%s129 + $0x3a0] sm:$0xff] %vm371, %v255
        %490 = vst.msk [vmem:[%s129 + $0x3a8] sm:$0xff] %vm371, %v256
        %491 = vst.msk [vmem:[%s129 + $0x3b0] sm:$0xff] %vm371, %v257
        %492 = vst.msk [vmem:[%s129 + $0x3b8] sm:$0xf] %vm375, %v258
        %493 = vst.msk [vmem:[%s129 + $0x3c0] sm:$0xff] %vm371, %v259
        %494 = vst.msk [vmem:[%s129 + $0x3c8] sm:$0xff] %vm371, %v260
        %495 = vst.msk [vmem:[%s129 + $0x3d0] sm:$0xff] %vm371, %v261
        %496 = vst.msk [vmem:[%s129 + $0x3d8] sm:$0xf] %vm375, %v262
        %497 = vst.msk [vmem:[%s129 + $0x3e0] sm:$0xff] %vm371, %v263
        %498 = vst.msk [vmem:[%s129 + $0x3e8] sm:$0xff] %vm371, %v264
        %499 = vst.msk [vmem:[%s129 + $0x3f0] sm:$0xff] %vm371, %v265
        %500 = vst.msk [vmem:[%s129 + $0x3f8] sm:$0xf] %vm375, %v266
        %501 = vst.msk [vmem:[%s129 + $0x400] sm:$0xff] %vm371, %v267
        %502 = vst.msk [vmem:[%s129 + $0x408] sm:$0xff] %vm371, %v268
        %503 = vst.msk [vmem:[%s129 + $0x410] sm:$0xff] %vm371, %v269
        %504 = vst.msk [vmem:[%s129 + $0x418] sm:$0xf] %vm375, %v270
        %505 = vst.msk [vmem:[%s129 + $0x420] sm:$0xff] %vm371, %v271
        %506 = vst.msk [vmem:[%s129 + $0x428] sm:$0xff] %vm371, %v272
        %507 = vst.msk [vmem:[%s129 + $0x430] sm:$0xff] %vm371, %v273
        %508 = vst.msk [vmem:[%s129 + $0x438] sm:$0xf] %vm375, %v274
        %509 = vst.msk [vmem:[%s129 + $0x440] sm:$0xff] %vm371, %v275
        %510 = vst.msk [vmem:[%s129 + $0x448] sm:$0xff] %vm371, %v276
        %511 = vst.msk [vmem:[%s129 + $0x450] sm:$0xff] %vm371, %v277
        %512 = vst.msk [vmem:[%s129 + $0x458] sm:$0xf] %vm375, %v278
        %513 = vst.msk [vmem:[%s129 + $0x460] sm:$0xff] %vm371, %v279
        %514 = vst.msk [vmem:[%s129 + $0x468] sm:$0xff] %vm371, %v280
        %515 = vst.msk [vmem:[%s129 + $0x470] sm:$0xff] %vm371, %v281
        %516 = vst.msk [vmem:[%s129 + $0x478] sm:$0xf] %vm375, %v282
        %517 = vst.msk [vmem:[%s129 + $0x480] sm:$0xff] %vm371, %v283
        %518 = vst.msk [vmem:[%s129 + $0x488] sm:$0xff] %vm371, %v284
        %519 = vst.msk [vmem:[%s129 + $0x490] sm:$0xff] %vm371, %v285
        %520 = vst.msk [vmem:[%s129 + $0x498] sm:$0xf] %vm375, %v286
        %521 = vst.msk [vmem:[%s129 + $0x4a0] sm:$0xff] %vm371, %v287
        %522 = vst.msk [vmem:[%s129 + $0x4a8] sm:$0xff] %vm371, %v288
        %523 = vst.msk [vmem:[%s129 + $0x4b0] sm:$0xff] %vm371, %v289
        %524 = vst.msk [vmem:[%s129 + $0x4b8] sm:$0xf] %vm375, %v290
        %525 = vst.msk [vmem:[%s129 + $0x4c0] sm:$0xff] %vm371, %v291
        %526 = vst.msk [vmem:[%s129 + $0x4c8] sm:$0xff] %vm371, %v292
        %527 = vst.msk [vmem:[%s129 + $0x4d0] sm:$0xff] %vm371, %v293
        %528 = vst.msk [vmem:[%s129 + $0x4d8] sm:$0xf] %vm375, %v294
        %529 = vst.msk [vmem:[%s129 + $0x4e0] sm:$0xff] %vm371, %v295
        %530 = vst.msk [vmem:[%s129 + $0x4e8] sm:$0xff] %vm371, %v296
        %531 = vst.msk [vmem:[%s129 + $0x4f0] sm:$0xff] %vm371, %v297
        %532 = vst.msk [vmem:[%s129 + $0x4f8] sm:$0xf] %vm375, %v298
        %533 = vst.msk [vmem:[%s129 + $0x500] sm:$0xff] %vm371, %v299
        %534 = vst.msk [vmem:[%s129 + $0x508] sm:$0xff] %vm371, %v300
        %535 = vst.msk [vmem:[%s129 + $0x510] sm:$0xff] %vm371, %v301
        %536 = vst.msk [vmem:[%s129 + $0x518] sm:$0xf] %vm375, %v302
        %537 = vst.msk [vmem:[%s129 + $0x520] sm:$0xff] %vm371, %v303
        %538 = vst.msk [vmem:[%s129 + $0x528] sm:$0xff] %vm371, %v304
        %539 = vst.msk [vmem:[%s129 + $0x530] sm:$0xff] %vm371, %v305
        %540 = vst.msk [vmem:[%s129 + $0x538] sm:$0xf] %vm375, %v306
        %541 = vst.msk [vmem:[%s129 + $0x540] sm:$0xff] %vm371, %v307
        %542 = vst.msk [vmem:[%s129 + $0x548] sm:$0xff] %vm371, %v308
        %543 = vst.msk [vmem:[%s129 + $0x550] sm:$0xff] %vm371, %v309
        %544 = vst.msk [vmem:[%s129 + $0x558] sm:$0xf] %vm375, %v310
        %545 = vst.msk [vmem:[%s129 + $0x560] sm:$0xff] %vm371, %v311
        %546 = vst.msk [vmem:[%s129 + $0x568] sm:$0xff] %vm371, %v312
        %547 = vst.msk [vmem:[%s129 + $0x570] sm:$0xff] %vm371, %v313
        %548 = vst.msk [vmem:[%s129 + $0x578] sm:$0xf] %vm375, %v314
        %549 = vst.msk [vmem:[%s129 + $0x580] sm:$0xff] %vm371, %v315
        %550 = vst.msk [vmem:[%s129 + $0x588] sm:$0xff] %vm371, %v316
        %551 = vst.msk [vmem:[%s129 + $0x590] sm:$0xff] %vm371, %v317
        %552 = vst.msk [vmem:[%s129 + $0x598] sm:$0xf] %vm375, %v318
        %553 = vst.msk [vmem:[%s129 + $0x5a0] sm:$0xff] %vm371, %v319
        %554 = vst.msk [vmem:[%s129 + $0x5a8] sm:$0xff] %vm371, %v320
        %555 = vst.msk [vmem:[%s129 + $0x5b0] sm:$0xff] %vm371, %v321
        %556 = vst.msk [vmem:[%s129 + $0x5b8] sm:$0xf] %vm375, %v322
        %557 = vst.msk [vmem:[%s129 + $0x5c0] sm:$0xff] %vm371, %v323
        %558 = vst.msk [vmem:[%s129 + $0x5c8] sm:$0xff] %vm371, %v324
        %559 = vst.msk [vmem:[%s129 + $0x5d0] sm:$0xff] %vm371, %v325
        %560 = vst.msk [vmem:[%s129 + $0x5d8] sm:$0xf] %vm375, %v326
        %561 = vst.msk [vmem:[%s129 + $0x5e0] sm:$0xff] %vm371, %v327
        %562 = vst.msk [vmem:[%s129 + $0x5e8] sm:$0xff] %vm371, %v328
        %563 = vst.msk [vmem:[%s129 + $0x5f0] sm:$0xff] %vm371, %v329
        %564 = vst.msk [vmem:[%s129 + $0x5f8] sm:$0xf] %vm375, %v330
        %565 = vst.msk [vmem:[%s129 + $0x600] sm:$0xff] %vm371, %v331
        %566 = vst.msk [vmem:[%s129 + $0x608] sm:$0xff] %vm371, %v332
        %567 = vst.msk [vmem:[%s129 + $0x610] sm:$0xff] %vm371, %v333
        %568 = vst.msk [vmem:[%s129 + $0x618] sm:$0xf] %vm375, %v334
        %569 = vst.msk [vmem:[%s129 + $0x620] sm:$0xff] %vm371, %v335
        %570 = vst.msk [vmem:[%s129 + $0x628] sm:$0xff] %vm371, %v336
        %571 = vst.msk [vmem:[%s129 + $0x630] sm:$0xff] %vm371, %v337
        %572 = vst.msk [vmem:[%s129 + $0x638] sm:$0xf] %vm375, %v338
        %573 = vst.msk [vmem:[%s129 + $0x640] sm:$0xff] %vm371, %v339
        %574 = vst.msk [vmem:[%s129 + $0x648] sm:$0xff] %vm371, %v340
        %575 = vst.msk [vmem:[%s129 + $0x650] sm:$0xff] %vm371, %v341
        %576 = vst.msk [vmem:[%s129 + $0x658] sm:$0xf] %vm375, %v342
        %577 = vst.msk [vmem:[%s129 + $0x660] sm:$0xff] %vm371, %v343
        %578 = vst.msk [vmem:[%s129 + $0x668] sm:$0xff] %vm371, %v344
        %579 = vst.msk [vmem:[%s129 + $0x670] sm:$0xff] %vm371, %v345
        %580 = vst.msk [vmem:[%s129 + $0x678] sm:$0xf] %vm375, %v346
        %581 = vst.msk [vmem:[%s129 + $0x680] sm:$0xff] %vm371, %v347
        %582 = vst.msk [vmem:[%s129 + $0x688] sm:$0xff] %vm371, %v348
        %583 = vst.msk [vmem:[%s129 + $0x690] sm:$0xff] %vm371, %v349
        %584 = vst.msk [vmem:[%s129 + $0x698] sm:$0xf] %vm375, %v350
        %585 = vst.msk [vmem:[%s129 + $0x6a0] sm:$0xff] %vm371, %v351
        %586 = vst.msk [vmem:[%s129 + $0x6a8] sm:$0xff] %vm371, %v352
        %587 = vst.msk [vmem:[%s129 + $0x6b0] sm:$0xff] %vm371, %v353
        %588 = vst.msk [vmem:[%s129 + $0x6b8] sm:$0xf] %vm375, %v354
        %589 = vst.msk [vmem:[%s129 + $0x6c0] sm:$0xff] %vm371, %v355
        %590 = vst.msk [vmem:[%s129 + $0x6c8] sm:$0xff] %vm371, %v356
        %591 = vst.msk [vmem:[%s129 + $0x6d0] sm:$0xff] %vm371, %v357
        %592 = vst.msk [vmem:[%s129 + $0x6d8] sm:$0xf] %vm375, %v358
        %593 = vst.msk [vmem:[%s129 + $0x6e0] sm:$0xff] %vm371, %v359
        %594 = vst.msk [vmem:[%s129 + $0x6e8] sm:$0xff] %vm371, %v360
        %595 = vst.msk [vmem:[%s129 + $0x6f0] sm:$0xff] %vm371, %v361
        %596 = vst.msk [vmem:[%s129 + $0x6f8] sm:$0xf] %vm375, %v362
        %597 = vst.msk [vmem:[%s129 + $0x700] sm:$0xff] %vm371, %v363
        %598 = vst.msk [vmem:[%s129 + $0x708] sm:$0xff] %vm371, %v364
        %599 = vst.msk [vmem:[%s129 + $0x710] sm:$0xff] %vm371, %v365
        %600 = vst.msk [vmem:[%s129 + $0x718] sm:$0xf] %vm375, %v366
        %601 = vst.msk [vmem:[%s129 + $0x720] sm:$0xff] %vm371, %v367
        %602 = vst.msk [vmem:[%s129 + $0x728] sm:$0xff] %vm371, %v368
        %603 = vst.msk [vmem:[%s129 + $0x730] sm:$0xff] %vm371, %v369
        %604 = vst.msk [vmem:[%s129 + $0x738] sm:$0xf] %vm375, %v370
        %s605 = sand.u32 %s62, 1
        %s606 = sand.u32 %s62, 1
        %s607 = smul.addr %s606, 1856
        %s608 = scalar_lea.vmem [#allocation2], %s607
        // Predicated region
        $region25: #{tpu_custom_call.1} parent=23 // pred_check
          %p609 = pneg %p72
        $region26: #{tpu_custom_call.1} parent=23 // pred_check_branch
          %611 = sbr.rel (%p609) target = $region28
        $region27: #{tpu_custom_call.1} parent=23 // pred_region
          %s612 = smul.addr %s17, 4
          %s613 = smul.addr %s16, 464
          %s614 = sadd.s32 %s612, %s613
          %s615 = smul.addr %s614, 8
          %s616 = scalar_lea.vmem %s1, %s615
          // Predicated region
          $region29: #{tpu_custom_call.1} parent=27 // pred_check
            _
          $region30: #{tpu_custom_call.1} parent=27 // pred_check_branch
            %618 = sbr.rel (0) target = $region32
          $region31: #{tpu_custom_call.1} parent=27 // pred_region
            // Predicated region
            $region33: #{tpu_custom_call.1} parent=31 // pred_check
              _
            $region34: #{tpu_custom_call.1} parent=31 // pred_check_branch
              %620 = sbr.rel (0) target = $region36
            $region35: #{tpu_custom_call.1} parent=31 // pred_region
              // Predicated region
              $region48: #{tpu_custom_call.1} parent=35 // pred_check
                _
              $region49: #{tpu_custom_call.1} parent=35 // pred_check_branch
                %1098 = sbr.rel (0) target = $region51
              $region50: #{tpu_custom_call.1} parent=35 // pred_region
                loop: start=0, step=1, limit=1
                $region52: #{tpu_custom_call.1} parent=50 // loop_pre_header
                  _
                $region53: #{tpu_custom_call.1} parent=50 // loop_header
                  %s1100 = sphi 0, %s1104
                  %p1101 = scmp.ge.s32.totalorder %s1100, 1
                  %s1105 = sphi %s608, %s608
                  %s1106 = sphi %s616, %s616
                $region54: #{tpu_custom_call.1} parent=50 // loop_header_branch
                  %1103 = sbr.rel (%p1101) target = $region58
                $region55: #{tpu_custom_call.1} parent=50 // loop_body
                  %v1107 = vld [vmem:[%s1105] sm:$0xff]
                  %1108 = vst [vmem:[%s1106] sm:$0xff] %v1107
                  %v1109 = vld [vmem:[%s1105 + $0x8] sm:$0xff]
                  %1110 = vst [vmem:[%s1106 + $0x8] sm:$0xff] %v1109
                  %v1111 = vld [vmem:[%s1105 + $0x10] sm:$0xff]
                  %1112 = vst [vmem:[%s1106 + $0x10] sm:$0xff] %v1111
                  %v1113 = vld [vmem:[%s1105 + $0x18] sm:$0xff]
                  %1114 = vst [vmem:[%s1106 + $0x18] sm:$0xff] %v1113
                  %v1115 = vld [vmem:[%s1105 + $0x20] sm:$0xff]
                  %1116 = vst [vmem:[%s1106 + $0x40] sm:$0xff] %v1115
                  %v1117 = vld [vmem:[%s1105 + $0x28] sm:$0xff]
                  %1118 = vst [vmem:[%s1106 + $0x48] sm:$0xff] %v1117
                  %v1119 = vld [vmem:[%s1105 + $0x30] sm:$0xff]
                  %1120 = vst [vmem:[%s1106 + $0x50] sm:$0xff] %v1119
                  %v1121 = vld [vmem:[%s1105 + $0x38] sm:$0xff]
                  %1122 = vst [vmem:[%s1106 + $0x58] sm:$0xff] %v1121
                  %v1123 = vld [vmem:[%s1105 + $0x40] sm:$0xff]
                  %1124 = vst [vmem:[%s1106 + $0x80] sm:$0xff] %v1123
                  %v1125 = vld [vmem:[%s1105 + $0x48] sm:$0xff]
                  %1126 = vst [vmem:[%s1106 + $0x88] sm:$0xff] %v1125
                  %v1127 = vld [vmem:[%s1105 + $0x50] sm:$0xff]
                  %1128 = vst [vmem:[%s1106 + $0x90] sm:$0xff] %v1127
                  %v1129 = vld [vmem:[%s1105 + $0x58] sm:$0xff]
                  %1130 = vst [vmem:[%s1106 + $0x98] sm:$0xff] %v1129
                  %v1131 = vld [vmem:[%s1105 + $0x60] sm:$0xff]
                  %1132 = vst [vmem:[%s1106 + $0xc0] sm:$0xff] %v1131
                  %v1133 = vld [vmem:[%s1105 + $0x68] sm:$0xff]
                  %1134 = vst [vmem:[%s1106 + $0xc8] sm:$0xff] %v1133
                  %v1135 = vld [vmem:[%s1105 + $0x70] sm:$0xff]
                  %1136 = vst [vmem:[%s1106 + $0xd0] sm:$0xff] %v1135
                  %v1137 = vld [vmem:[%s1105 + $0x78] sm:$0xff]
                  %1138 = vst [vmem:[%s1106 + $0xd8] sm:$0xff] %v1137
                  %v1139 = vld [vmem:[%s1105 + $0x80] sm:$0xff]
                  %1140 = vst [vmem:[%s1106 + $0x100] sm:$0xff] %v1139
                  %v1141 = vld [vmem:[%s1105 + $0x88] sm:$0xff]
                  %1142 = vst [vmem:[%s1106 + $0x108] sm:$0xff] %v1141
                  %v1143 = vld [vmem:[%s1105 + $0x90] sm:$0xff]
                  %1144 = vst [vmem:[%s1106 + $0x110] sm:$0xff] %v1143
                  %v1145 = vld [vmem:[%s1105 + $0x98] sm:$0xff]
                  %1146 = vst [vmem:[%s1106 + $0x118] sm:$0xff] %v1145
                  %v1147 = vld [vmem:[%s1105 + $0xa0] sm:$0xff]
                  %1148 = vst [vmem:[%s1106 + $0x140] sm:$0xff] %v1147
                  %v1149 = vld [vmem:[%s1105 + $0xa8] sm:$0xff]
                  %1150 = vst [vmem:[%s1106 + $0x148] sm:$0xff] %v1149
                  %v1151 = vld [vmem:[%s1105 + $0xb0] sm:$0xff]
                  %1152 = vst [vmem:[%s1106 + $0x150] sm:$0xff] %v1151
                  %v1153 = vld [vmem:[%s1105 + $0xb8] sm:$0xff]
                  %1154 = vst [vmem:[%s1106 + $0x158] sm:$0xff] %v1153
                  %v1155 = vld [vmem:[%s1105 + $0xc0] sm:$0xff]
                  %1156 = vst [vmem:[%s1106 + $0x180] sm:$0xff] %v1155
                  %v1157 = vld [vmem:[%s1105 + $0xc8] sm:$0xff]
                  %1158 = vst [vmem:[%s1106 + $0x188] sm:$0xff] %v1157
                  %v1159 = vld [vmem:[%s1105 + $0xd0] sm:$0xff]
                  %1160 = vst [vmem:[%s1106 + $0x190] sm:$0xff] %v1159
                  %v1161 = vld [vmem:[%s1105 + $0xd8] sm:$0xff]
                  %1162 = vst [vmem:[%s1106 + $0x198] sm:$0xff] %v1161
                  %v1163 = vld [vmem:[%s1105 + $0xe0] sm:$0xff]
                  %1164 = vst [vmem:[%s1106 + $0x1c0] sm:$0xff] %v1163
                  %v1165 = vld [vmem:[%s1105 + $0xe8] sm:$0xff]
                  %1166 = vst [vmem:[%s1106 + $0x1c8] sm:$0xff] %v1165
                  %v1167 = vld [vmem:[%s1105 + $0xf0] sm:$0xff]
                  %1168 = vst [vmem:[%s1106 + $0x1d0] sm:$0xff] %v1167
                  %v1169 = vld [vmem:[%s1105 + $0xf8] sm:$0xff]
                  %1170 = vst [vmem:[%s1106 + $0x1d8] sm:$0xff] %v1169
                  %v1171 = vld [vmem:[%s1105 + $0x100] sm:$0xff]
                  %1172 = vst [vmem:[%s1106 + $0x200] sm:$0xff] %v1171
                  %v1173 = vld [vmem:[%s1105 + $0x108] sm:$0xff]
                  %1174 = vst [vmem:[%s1106 + $0x208] sm:$0xff] %v1173
                  %v1175 = vld [vmem:[%s1105 + $0x110] sm:$0xff]
                  %1176 = vst [vmem:[%s1106 + $0x210] sm:$0xff] %v1175
                  %v1177 = vld [vmem:[%s1105 + $0x118] sm:$0xff]
                  %1178 = vst [vmem:[%s1106 + $0x218] sm:$0xff] %v1177
                  %v1179 = vld [vmem:[%s1105 + $0x120] sm:$0xff]
                  %1180 = vst [vmem:[%s1106 + $0x240] sm:$0xff] %v1179
                  %v1181 = vld [vmem:[%s1105 + $0x128] sm:$0xff]
                  %1182 = vst [vmem:[%s1106 + $0x248] sm:$0xff] %v1181
                  %v1183 = vld [vmem:[%s1105 + $0x130] sm:$0xff]
                  %1184 = vst [vmem:[%s1106 + $0x250] sm:$0xff] %v1183
                  %v1185 = vld [vmem:[%s1105 + $0x138] sm:$0xff]
                  %1186 = vst [vmem:[%s1106 + $0x258] sm:$0xff] %v1185
                  %v1187 = vld [vmem:[%s1105 + $0x140] sm:$0xff]
                  %1188 = vst [vmem:[%s1106 + $0x280] sm:$0xff] %v1187
                  %v1189 = vld [vmem:[%s1105 + $0x148] sm:$0xff]
                  %1190 = vst [vmem:[%s1106 + $0x288] sm:$0xff] %v1189
                  %v1191 = vld [vmem:[%s1105 + $0x150] sm:$0xff]
                  %1192 = vst [vmem:[%s1106 + $0x290] sm:$0xff] %v1191
                  %v1193 = vld [vmem:[%s1105 + $0x158] sm:$0xff]
                  %1194 = vst [vmem:[%s1106 + $0x298] sm:$0xff] %v1193
                  %v1195 = vld [vmem:[%s1105 + $0x160] sm:$0xff]
                  %1196 = vst [vmem:[%s1106 + $0x2c0] sm:$0xff] %v1195
                  %v1197 = vld [vmem:[%s1105 + $0x168] sm:$0xff]
                  %1198 = vst [vmem:[%s1106 + $0x2c8] sm:$0xff] %v1197
                  %v1199 = vld [vmem:[%s1105 + $0x170] sm:$0xff]
                  %1200 = vst [vmem:[%s1106 + $0x2d0] sm:$0xff] %v1199
                  %v1201 = vld [vmem:[%s1105 + $0x178] sm:$0xff]
                  %1202 = vst [vmem:[%s1106 + $0x2d8] sm:$0xff] %v1201
                  %v1203 = vld [vmem:[%s1105 + $0x180] sm:$0xff]
                  %1204 = vst [vmem:[%s1106 + $0x300] sm:$0xff] %v1203
                  %v1205 = vld [vmem:[%s1105 + $0x188] sm:$0xff]
                  %1206 = vst [vmem:[%s1106 + $0x308] sm:$0xff] %v1205
                  %v1207 = vld [vmem:[%s1105 + $0x190] sm:$0xff]
                  %1208 = vst [vmem:[%s1106 + $0x310] sm:$0xff] %v1207
                  %v1209 = vld [vmem:[%s1105 + $0x198] sm:$0xff]
                  %1210 = vst [vmem:[%s1106 + $0x318] sm:$0xff] %v1209
                  %v1211 = vld [vmem:[%s1105 + $0x1a0] sm:$0xff]
                  %1212 = vst [vmem:[%s1106 + $0x340] sm:$0xff] %v1211
                  %v1213 = vld [vmem:[%s1105 + $0x1a8] sm:$0xff]
                  %1214 = vst [vmem:[%s1106 + $0x348] sm:$0xff] %v1213
                  %v1215 = vld [vmem:[%s1105 + $0x1b0] sm:$0xff]
                  %1216 = vst [vmem:[%s1106 + $0x350] sm:$0xff] %v1215
                  %v1217 = vld [vmem:[%s1105 + $0x1b8] sm:$0xff]
                  %1218 = vst [vmem:[%s1106 + $0x358] sm:$0xff] %v1217
                  %v1219 = vld [vmem:[%s1105 + $0x1c0] sm:$0xff]
                  %1220 = vst [vmem:[%s1106 + $0x380] sm:$0xff] %v1219
                  %v1221 = vld [vmem:[%s1105 + $0x1c8] sm:$0xff]
                  %1222 = vst [vmem:[%s1106 + $0x388] sm:$0xff] %v1221
                  %v1223 = vld [vmem:[%s1105 + $0x1d0] sm:$0xff]
                  %1224 = vst [vmem:[%s1106 + $0x390] sm:$0xff] %v1223
                  %v1225 = vld [vmem:[%s1105 + $0x1d8] sm:$0xff]
                  %1226 = vst [vmem:[%s1106 + $0x398] sm:$0xff] %v1225
                  %v1227 = vld [vmem:[%s1105 + $0x1e0] sm:$0xff]
                  %1228 = vst [vmem:[%s1106 + $0x3c0] sm:$0xff] %v1227
                  %v1229 = vld [vmem:[%s1105 + $0x1e8] sm:$0xff]
                  %1230 = vst [vmem:[%s1106 + $0x3c8] sm:$0xff] %v1229
                  %v1231 = vld [vmem:[%s1105 + $0x1f0] sm:$0xff]
                  %1232 = vst [vmem:[%s1106 + $0x3d0] sm:$0xff] %v1231
                  %v1233 = vld [vmem:[%s1105 + $0x1f8] sm:$0xff]
                  %1234 = vst [vmem:[%s1106 + $0x3d8] sm:$0xff] %v1233
                  %v1235 = vld [vmem:[%s1105 + $0x200] sm:$0xff]
                  %1236 = vst [vmem:[%s1106 + $0x400] sm:$0xff] %v1235
                  %v1237 = vld [vmem:[%s1105 + $0x208] sm:$0xff]
                  %1238 = vst [vmem:[%s1106 + $0x408] sm:$0xff] %v1237
                  %v1239 = vld [vmem:[%s1105 + $0x210] sm:$0xff]
                  %1240 = vst [vmem:[%s1106 + $0x410] sm:$0xff] %v1239
                  %v1241 = vld [vmem:[%s1105 + $0x218] sm:$0xff]
                  %1242 = vst [vmem:[%s1106 + $0x418] sm:$0xff] %v1241
                  %v1243 = vld [vmem:[%s1105 + $0x220] sm:$0xff]
                  %1244 = vst [vmem:[%s1106 + $0x440] sm:$0xff] %v1243
                  %v1245 = vld [vmem:[%s1105 + $0x228] sm:$0xff]
                  %1246 = vst [vmem:[%s1106 + $0x448] sm:$0xff] %v1245
                  %v1247 = vld [vmem:[%s1105 + $0x230] sm:$0xff]
                  %1248 = vst [vmem:[%s1106 + $0x450] sm:$0xff] %v1247
                  %v1249 = vld [vmem:[%s1105 + $0x238] sm:$0xff]
                  %1250 = vst [vmem:[%s1106 + $0x458] sm:$0xff] %v1249
                  %v1251 = vld [vmem:[%s1105 + $0x240] sm:$0xff]
                  %1252 = vst [vmem:[%s1106 + $0x480] sm:$0xff] %v1251
                  %v1253 = vld [vmem:[%s1105 + $0x248] sm:$0xff]
                  %1254 = vst [vmem:[%s1106 + $0x488] sm:$0xff] %v1253
                  %v1255 = vld [vmem:[%s1105 + $0x250] sm:$0xff]
                  %1256 = vst [vmem:[%s1106 + $0x490] sm:$0xff] %v1255
                  %v1257 = vld [vmem:[%s1105 + $0x258] sm:$0xff]
                  %1258 = vst [vmem:[%s1106 + $0x498] sm:$0xff] %v1257
                  %v1259 = vld [vmem:[%s1105 + $0x260] sm:$0xff]
                  %1260 = vst [vmem:[%s1106 + $0x4c0] sm:$0xff] %v1259
                  %v1261 = vld [vmem:[%s1105 + $0x268] sm:$0xff]
                  %1262 = vst [vmem:[%s1106 + $0x4c8] sm:$0xff] %v1261
                  %v1263 = vld [vmem:[%s1105 + $0x270] sm:$0xff]
                  %1264 = vst [vmem:[%s1106 + $0x4d0] sm:$0xff] %v1263
                  %v1265 = vld [vmem:[%s1105 + $0x278] sm:$0xff]
                  %1266 = vst [vmem:[%s1106 + $0x4d8] sm:$0xff] %v1265
                  %v1267 = vld [vmem:[%s1105 + $0x280] sm:$0xff]
                  %1268 = vst [vmem:[%s1106 + $0x500] sm:$0xff] %v1267
                  %v1269 = vld [vmem:[%s1105 + $0x288] sm:$0xff]
                  %1270 = vst [vmem:[%s1106 + $0x508] sm:$0xff] %v1269
                  %v1271 = vld [vmem:[%s1105 + $0x290] sm:$0xff]
                  %1272 = vst [vmem:[%s1106 + $0x510] sm:$0xff] %v1271
                  %v1273 = vld [vmem:[%s1105 + $0x298] sm:$0xff]
                  %1274 = vst [vmem:[%s1106 + $0x518] sm:$0xff] %v1273
                  %v1275 = vld [vmem:[%s1105 + $0x2a0] sm:$0xff]
                  %1276 = vst [vmem:[%s1106 + $0x540] sm:$0xff] %v1275
                  %v1277 = vld [vmem:[%s1105 + $0x2a8] sm:$0xff]
                  %1278 = vst [vmem:[%s1106 + $0x548] sm:$0xff] %v1277
                  %v1279 = vld [vmem:[%s1105 + $0x2b0] sm:$0xff]
                  %1280 = vst [vmem:[%s1106 + $0x550] sm:$0xff] %v1279
                  %v1281 = vld [vmem:[%s1105 + $0x2b8] sm:$0xff]
                  %1282 = vst [vmem:[%s1106 + $0x558] sm:$0xff] %v1281
                  %v1283 = vld [vmem:[%s1105 + $0x2c0] sm:$0xff]
                  %1284 = vst [vmem:[%s1106 + $0x580] sm:$0xff] %v1283
                  %v1285 = vld [vmem:[%s1105 + $0x2c8] sm:$0xff]
                  %1286 = vst [vmem:[%s1106 + $0x588] sm:$0xff] %v1285
                  %v1287 = vld [vmem:[%s1105 + $0x2d0] sm:$0xff]
                  %1288 = vst [vmem:[%s1106 + $0x590] sm:$0xff] %v1287
                  %v1289 = vld [vmem:[%s1105 + $0x2d8] sm:$0xff]
                  %1290 = vst [vmem:[%s1106 + $0x598] sm:$0xff] %v1289
                  %v1291 = vld [vmem:[%s1105 + $0x2e0] sm:$0xff]
                  %1292 = vst [vmem:[%s1106 + $0x5c0] sm:$0xff] %v1291
                  %v1293 = vld [vmem:[%s1105 + $0x2e8] sm:$0xff]
                  %1294 = vst [vmem:[%s1106 + $0x5c8] sm:$0xff] %v1293
                  %v1295 = vld [vmem:[%s1105 + $0x2f0] sm:$0xff]
                  %1296 = vst [vmem:[%s1106 + $0x5d0] sm:$0xff] %v1295
                  %v1297 = vld [vmem:[%s1105 + $0x2f8] sm:$0xff]
                  %1298 = vst [vmem:[%s1106 + $0x5d8] sm:$0xff] %v1297
                  %v1299 = vld [vmem:[%s1105 + $0x300] sm:$0xff]
                  %1300 = vst [vmem:[%s1106 + $0x600] sm:$0xff] %v1299
                  %v1301 = vld [vmem:[%s1105 + $0x308] sm:$0xff]
                  %1302 = vst [vmem:[%s1106 + $0x608] sm:$0xff] %v1301
                  %v1303 = vld [vmem:[%s1105 + $0x310] sm:$0xff]
                  %1304 = vst [vmem:[%s1106 + $0x610] sm:$0xff] %v1303
                  %v1305 = vld [vmem:[%s1105 + $0x318] sm:$0xff]
                  %1306 = vst [vmem:[%s1106 + $0x618] sm:$0xff] %v1305
                  %v1307 = vld [vmem:[%s1105 + $0x320] sm:$0xff]
                  %1308 = vst [vmem:[%s1106 + $0x640] sm:$0xff] %v1307
                  %v1309 = vld [vmem:[%s1105 + $0x328] sm:$0xff]
                  %1310 = vst [vmem:[%s1106 + $0x648] sm:$0xff] %v1309
                  %v1311 = vld [vmem:[%s1105 + $0x330] sm:$0xff]
                  %1312 = vst [vmem:[%s1106 + $0x650] sm:$0xff] %v1311
                  %v1313 = vld [vmem:[%s1105 + $0x338] sm:$0xff]
                  %1314 = vst [vmem:[%s1106 + $0x658] sm:$0xff] %v1313
                  %v1315 = vld [vmem:[%s1105 + $0x340] sm:$0xff]
                  %1316 = vst [vmem:[%s1106 + $0x680] sm:$0xff] %v1315
                  %v1317 = vld [vmem:[%s1105 + $0x348] sm:$0xff]
                  %1318 = vst [vmem:[%s1106 + $0x688] sm:$0xff] %v1317
                  %v1319 = vld [vmem:[%s1105 + $0x350] sm:$0xff]
                  %1320 = vst [vmem:[%s1106 + $0x690] sm:$0xff] %v1319
                  %v1321 = vld [vmem:[%s1105 + $0x358] sm:$0xff]
                  %1322 = vst [vmem:[%s1106 + $0x698] sm:$0xff] %v1321
                  %v1323 = vld [vmem:[%s1105 + $0x360] sm:$0xff]
                  %1324 = vst [vmem:[%s1106 + $0x6c0] sm:$0xff] %v1323
                  %v1325 = vld [vmem:[%s1105 + $0x368] sm:$0xff]
                  %1326 = vst [vmem:[%s1106 + $0x6c8] sm:$0xff] %v1325
                  %v1327 = vld [vmem:[%s1105 + $0x370] sm:$0xff]
                  %1328 = vst [vmem:[%s1106 + $0x6d0] sm:$0xff] %v1327
                  %v1329 = vld [vmem:[%s1105 + $0x378] sm:$0xff]
                  %1330 = vst [vmem:[%s1106 + $0x6d8] sm:$0xff] %v1329
                  %v1331 = vld [vmem:[%s1105 + $0x380] sm:$0xff]
                  %1332 = vst [vmem:[%s1106 + $0x700] sm:$0xff] %v1331
                  %v1333 = vld [vmem:[%s1105 + $0x388] sm:$0xff]
                  %1334 = vst [vmem:[%s1106 + $0x708] sm:$0xff] %v1333
                  %v1335 = vld [vmem:[%s1105 + $0x390] sm:$0xff]
                  %1336 = vst [vmem:[%s1106 + $0x710] sm:$0xff] %v1335
                  %v1337 = vld [vmem:[%s1105 + $0x398] sm:$0xff]
                  %1338 = vst [vmem:[%s1106 + $0x718] sm:$0xff] %v1337
                  %v1339 = vld [vmem:[%s1105 + $0x3a0] sm:$0xff]
                  %1340 = vst [vmem:[%s1106 + $0x740] sm:$0xff] %v1339
                  %v1341 = vld [vmem:[%s1105 + $0x3a8] sm:$0xff]
                  %1342 = vst [vmem:[%s1106 + $0x748] sm:$0xff] %v1341
                  %v1343 = vld [vmem:[%s1105 + $0x3b0] sm:$0xff]
                  %1344 = vst [vmem:[%s1106 + $0x750] sm:$0xff] %v1343
                  %v1345 = vld [vmem:[%s1105 + $0x3b8] sm:$0xff]
                  %1346 = vst [vmem:[%s1106 + $0x758] sm:$0xff] %v1345
                  %v1347 = vld [vmem:[%s1105 + $0x3c0] sm:$0xff]
                  %1348 = vst [vmem:[%s1106 + $0x780] sm:$0xff] %v1347
                  %v1349 = vld [vmem:[%s1105 + $0x3c8] sm:$0xff]
                  %1350 = vst [vmem:[%s1106 + $0x788] sm:$0xff] %v1349
                  %v1351 = vld [vmem:[%s1105 + $0x3d0] sm:$0xff]
                  %1352 = vst [vmem:[%s1106 + $0x790] sm:$0xff] %v1351
                  %v1353 = vld [vmem:[%s1105 + $0x3d8] sm:$0xff]
                  %1354 = vst [vmem:[%s1106 + $0x798] sm:$0xff] %v1353
                  %v1355 = vld [vmem:[%s1105 + $0x3e0] sm:$0xff]
                  %1356 = vst [vmem:[%s1106 + $0x7c0] sm:$0xff] %v1355
                  %v1357 = vld [vmem:[%s1105 + $0x3e8] sm:$0xff]
                  %1358 = vst [vmem:[%s1106 + $0x7c8] sm:$0xff] %v1357
                  %v1359 = vld [vmem:[%s1105 + $0x3f0] sm:$0xff]
                  %1360 = vst [vmem:[%s1106 + $0x7d0] sm:$0xff] %v1359
                  %v1361 = vld [vmem:[%s1105 + $0x3f8] sm:$0xff]
                  %1362 = vst [vmem:[%s1106 + $0x7d8] sm:$0xff] %v1361
                  %v1363 = vld [vmem:[%s1105 + $0x400] sm:$0xff]
                  %1364 = vst [vmem:[%s1106 + $0x800] sm:$0xff] %v1363
                  %v1365 = vld [vmem:[%s1105 + $0x408] sm:$0xff]
                  %1366 = vst [vmem:[%s1106 + $0x808] sm:$0xff] %v1365
                  %v1367 = vld [vmem:[%s1105 + $0x410] sm:$0xff]
                  %1368 = vst [vmem:[%s1106 + $0x810] sm:$0xff] %v1367
                  %v1369 = vld [vmem:[%s1105 + $0x418] sm:$0xff]
                  %1370 = vst [vmem:[%s1106 + $0x818] sm:$0xff] %v1369
                  %v1371 = vld [vmem:[%s1105 + $0x420] sm:$0xff]
                  %1372 = vst [vmem:[%s1106 + $0x840] sm:$0xff] %v1371
                  %v1373 = vld [vmem:[%s1105 + $0x428] sm:$0xff]
                  %1374 = vst [vmem:[%s1106 + $0x848] sm:$0xff] %v1373
                  %v1375 = vld [vmem:[%s1105 + $0x430] sm:$0xff]
                  %1376 = vst [vmem:[%s1106 + $0x850] sm:$0xff] %v1375
                  %v1377 = vld [vmem:[%s1105 + $0x438] sm:$0xff]
                  %1378 = vst [vmem:[%s1106 + $0x858] sm:$0xff] %v1377
                  %v1379 = vld [vmem:[%s1105 + $0x440] sm:$0xff]
                  %1380 = vst [vmem:[%s1106 + $0x880] sm:$0xff] %v1379
                  %v1381 = vld [vmem:[%s1105 + $0x448] sm:$0xff]
                  %1382 = vst [vmem:[%s1106 + $0x888] sm:$0xff] %v1381
                  %v1383 = vld [vmem:[%s1105 + $0x450] sm:$0xff]
                  %1384 = vst [vmem:[%s1106 + $0x890] sm:$0xff] %v1383
                  %v1385 = vld [vmem:[%s1105 + $0x458] sm:$0xff]
                  %1386 = vst [vmem:[%s1106 + $0x898] sm:$0xff] %v1385
                  %v1387 = vld [vmem:[%s1105 + $0x460] sm:$0xff]
                  %1388 = vst [vmem:[%s1106 + $0x8c0] sm:$0xff] %v1387
                  %v1389 = vld [vmem:[%s1105 + $0x468] sm:$0xff]
                  %1390 = vst [vmem:[%s1106 + $0x8c8] sm:$0xff] %v1389
                  %v1391 = vld [vmem:[%s1105 + $0x470] sm:$0xff]
                  %1392 = vst [vmem:[%s1106 + $0x8d0] sm:$0xff] %v1391
                  %v1393 = vld [vmem:[%s1105 + $0x478] sm:$0xff]
                  %1394 = vst [vmem:[%s1106 + $0x8d8] sm:$0xff] %v1393
                  %v1395 = vld [vmem:[%s1105 + $0x480] sm:$0xff]
                  %1396 = vst [vmem:[%s1106 + $0x900] sm:$0xff] %v1395
                  %v1397 = vld [vmem:[%s1105 + $0x488] sm:$0xff]
                  %1398 = vst [vmem:[%s1106 + $0x908] sm:$0xff] %v1397
                  %v1399 = vld [vmem:[%s1105 + $0x490] sm:$0xff]
                  %1400 = vst [vmem:[%s1106 + $0x910] sm:$0xff] %v1399
                  %v1401 = vld [vmem:[%s1105 + $0x498] sm:$0xff]
                  %1402 = vst [vmem:[%s1106 + $0x918] sm:$0xff] %v1401
                  %v1403 = vld [vmem:[%s1105 + $0x4a0] sm:$0xff]
                  %1404 = vst [vmem:[%s1106 + $0x940] sm:$0xff] %v1403
                  %v1405 = vld [vmem:[%s1105 + $0x4a8] sm:$0xff]
                  %1406 = vst [vmem:[%s1106 + $0x948] sm:$0xff] %v1405
                  %v1407 = vld [vmem:[%s1105 + $0x4b0] sm:$0xff]
                  %1408 = vst [vmem:[%s1106 + $0x950] sm:$0xff] %v1407
                  %v1409 = vld [vmem:[%s1105 + $0x4b8] sm:$0xff]
                  %1410 = vst [vmem:[%s1106 + $0x958] sm:$0xff] %v1409
                  %v1411 = vld [vmem:[%s1105 + $0x4c0] sm:$0xff]
                  %1412 = vst [vmem:[%s1106 + $0x980] sm:$0xff] %v1411
                  %v1413 = vld [vmem:[%s1105 + $0x4c8] sm:$0xff]
                  %1414 = vst [vmem:[%s1106 + $0x988] sm:$0xff] %v1413
                  %v1415 = vld [vmem:[%s1105 + $0x4d0] sm:$0xff]
                  %1416 = vst [vmem:[%s1106 + $0x990] sm:$0xff] %v1415
                  %v1417 = vld [vmem:[%s1105 + $0x4d8] sm:$0xff]
                  %1418 = vst [vmem:[%s1106 + $0x998] sm:$0xff] %v1417
                  %v1419 = vld [vmem:[%s1105 + $0x4e0] sm:$0xff]
                  %1420 = vst [vmem:[%s1106 + $0x9c0] sm:$0xff] %v1419
                  %v1421 = vld [vmem:[%s1105 + $0x4e8] sm:$0xff]
                  %1422 = vst [vmem:[%s1106 + $0x9c8] sm:$0xff] %v1421
                  %v1423 = vld [vmem:[%s1105 + $0x4f0] sm:$0xff]
                  %1424 = vst [vmem:[%s1106 + $0x9d0] sm:$0xff] %v1423
                  %v1425 = vld [vmem:[%s1105 + $0x4f8] sm:$0xff]
                  %1426 = vst [vmem:[%s1106 + $0x9d8] sm:$0xff] %v1425
                  %v1427 = vld [vmem:[%s1105 + $0x500] sm:$0xff]
                  %1428 = vst [vmem:[%s1106 + $0xa00] sm:$0xff] %v1427
                  %v1429 = vld [vmem:[%s1105 + $0x508] sm:$0xff]
                  %1430 = vst [vmem:[%s1106 + $0xa08] sm:$0xff] %v1429
                  %v1431 = vld [vmem:[%s1105 + $0x510] sm:$0xff]
                  %1432 = vst [vmem:[%s1106 + $0xa10] sm:$0xff] %v1431
                  %v1433 = vld [vmem:[%s1105 + $0x518] sm:$0xff]
                  %1434 = vst [vmem:[%s1106 + $0xa18] sm:$0xff] %v1433
                  %v1435 = vld [vmem:[%s1105 + $0x520] sm:$0xff]
                  %1436 = vst [vmem:[%s1106 + $0xa40] sm:$0xff] %v1435
                  %v1437 = vld [vmem:[%s1105 + $0x528] sm:$0xff]
                  %1438 = vst [vmem:[%s1106 + $0xa48] sm:$0xff] %v1437
                  %v1439 = vld [vmem:[%s1105 + $0x530] sm:$0xff]
                  %1440 = vst [vmem:[%s1106 + $0xa50] sm:$0xff] %v1439
                  %v1441 = vld [vmem:[%s1105 + $0x538] sm:$0xff]
                  %1442 = vst [vmem:[%s1106 + $0xa58] sm:$0xff] %v1441
                  %v1443 = vld [vmem:[%s1105 + $0x540] sm:$0xff]
                  %1444 = vst [vmem:[%s1106 + $0xa80] sm:$0xff] %v1443
                  %v1445 = vld [vmem:[%s1105 + $0x548] sm:$0xff]
                  %1446 = vst [vmem:[%s1106 + $0xa88] sm:$0xff] %v1445
                  %v1447 = vld [vmem:[%s1105 + $0x550] sm:$0xff]
                  %1448 = vst [vmem:[%s1106 + $0xa90] sm:$0xff] %v1447
                  %v1449 = vld [vmem:[%s1105 + $0x558] sm:$0xff]
                  %1450 = vst [vmem:[%s1106 + $0xa98] sm:$0xff] %v1449
                  %v1451 = vld [vmem:[%s1105 + $0x560] sm:$0xff]
                  %1452 = vst [vmem:[%s1106 + $0xac0] sm:$0xff] %v1451
                  %v1453 = vld [vmem:[%s1105 + $0x568] sm:$0xff]
                  %1454 = vst [vmem:[%s1106 + $0xac8] sm:$0xff] %v1453
                  %v1455 = vld [vmem:[%s1105 + $0x570] sm:$0xff]
                  %1456 = vst [vmem:[%s1106 + $0xad0] sm:$0xff] %v1455
                  %v1457 = vld [vmem:[%s1105 + $0x578] sm:$0xff]
                  %1458 = vst [vmem:[%s1106 + $0xad8] sm:$0xff] %v1457
                  %v1459 = vld [vmem:[%s1105 + $0x580] sm:$0xff]
                  %1460 = vst [vmem:[%s1106 + $0xb00] sm:$0xff] %v1459
                  %v1461 = vld [vmem:[%s1105 + $0x588] sm:$0xff]
                  %1462 = vst [vmem:[%s1106 + $0xb08] sm:$0xff] %v1461
                  %v1463 = vld [vmem:[%s1105 + $0x590] sm:$0xff]
                  %1464 = vst [vmem:[%s1106 + $0xb10] sm:$0xff] %v1463
                  %v1465 = vld [vmem:[%s1105 + $0x598] sm:$0xff]
                  %1466 = vst [vmem:[%s1106 + $0xb18] sm:$0xff] %v1465
                  %v1467 = vld [vmem:[%s1105 + $0x5a0] sm:$0xff]
                  %1468 = vst [vmem:[%s1106 + $0xb40] sm:$0xff] %v1467
                  %v1469 = vld [vmem:[%s1105 + $0x5a8] sm:$0xff]
                  %1470 = vst [vmem:[%s1106 + $0xb48] sm:$0xff] %v1469
                  %v1471 = vld [vmem:[%s1105 + $0x5b0] sm:$0xff]
                  %1472 = vst [vmem:[%s1106 + $0xb50] sm:$0xff] %v1471
                  %v1473 = vld [vmem:[%s1105 + $0x5b8] sm:$0xff]
                  %1474 = vst [vmem:[%s1106 + $0xb58] sm:$0xff] %v1473
                  %v1475 = vld [vmem:[%s1105 + $0x5c0] sm:$0xff]
                  %1476 = vst [vmem:[%s1106 + $0xb80] sm:$0xff] %v1475
                  %v1477 = vld [vmem:[%s1105 + $0x5c8] sm:$0xff]
                  %1478 = vst [vmem:[%s1106 + $0xb88] sm:$0xff] %v1477
                  %v1479 = vld [vmem:[%s1105 + $0x5d0] sm:$0xff]
                  %1480 = vst [vmem:[%s1106 + $0xb90] sm:$0xff] %v1479
                  %v1481 = vld [vmem:[%s1105 + $0x5d8] sm:$0xff]
                  %1482 = vst [vmem:[%s1106 + $0xb98] sm:$0xff] %v1481
                  %v1483 = vld [vmem:[%s1105 + $0x5e0] sm:$0xff]
                  %1484 = vst [vmem:[%s1106 + $0xbc0] sm:$0xff] %v1483
                  %v1485 = vld [vmem:[%s1105 + $0x5e8] sm:$0xff]
                  %1486 = vst [vmem:[%s1106 + $0xbc8] sm:$0xff] %v1485
                  %v1487 = vld [vmem:[%s1105 + $0x5f0] sm:$0xff]
                  %1488 = vst [vmem:[%s1106 + $0xbd0] sm:$0xff] %v1487
                  %v1489 = vld [vmem:[%s1105 + $0x5f8] sm:$0xff]
                  %1490 = vst [vmem:[%s1106 + $0xbd8] sm:$0xff] %v1489
                  %v1491 = vld [vmem:[%s1105 + $0x600] sm:$0xff]
                  %1492 = vst [vmem:[%s1106 + $0xc00] sm:$0xff] %v1491
                  %v1493 = vld [vmem:[%s1105 + $0x608] sm:$0xff]
                  %1494 = vst [vmem:[%s1106 + $0xc08] sm:$0xff] %v1493
                  %v1495 = vld [vmem:[%s1105 + $0x610] sm:$0xff]
                  %1496 = vst [vmem:[%s1106 + $0xc10] sm:$0xff] %v1495
                  %v1497 = vld [vmem:[%s1105 + $0x618] sm:$0xff]
                  %1498 = vst [vmem:[%s1106 + $0xc18] sm:$0xff] %v1497
                  %v1499 = vld [vmem:[%s1105 + $0x620] sm:$0xff]
                  %1500 = vst [vmem:[%s1106 + $0xc40] sm:$0xff] %v1499
                  %v1501 = vld [vmem:[%s1105 + $0x628] sm:$0xff]
                  %1502 = vst [vmem:[%s1106 + $0xc48] sm:$0xff] %v1501
                  %v1503 = vld [vmem:[%s1105 + $0x630] sm:$0xff]
                  %1504 = vst [vmem:[%s1106 + $0xc50] sm:$0xff] %v1503
                  %v1505 = vld [vmem:[%s1105 + $0x638] sm:$0xff]
                  %1506 = vst [vmem:[%s1106 + $0xc58] sm:$0xff] %v1505
                  %v1507 = vld [vmem:[%s1105 + $0x640] sm:$0xff]
                  %1508 = vst [vmem:[%s1106 + $0xc80] sm:$0xff] %v1507
                  %v1509 = vld [vmem:[%s1105 + $0x648] sm:$0xff]
                  %1510 = vst [vmem:[%s1106 + $0xc88] sm:$0xff] %v1509
                  %v1511 = vld [vmem:[%s1105 + $0x650] sm:$0xff]
                  %1512 = vst [vmem:[%s1106 + $0xc90] sm:$0xff] %v1511
                  %v1513 = vld [vmem:[%s1105 + $0x658] sm:$0xff]
                  %1514 = vst [vmem:[%s1106 + $0xc98] sm:$0xff] %v1513
                  %v1515 = vld [vmem:[%s1105 + $0x660] sm:$0xff]
                  %1516 = vst [vmem:[%s1106 + $0xcc0] sm:$0xff] %v1515
                  %v1517 = vld [vmem:[%s1105 + $0x668] sm:$0xff]
                  %1518 = vst [vmem:[%s1106 + $0xcc8] sm:$0xff] %v1517
                  %v1519 = vld [vmem:[%s1105 + $0x670] sm:$0xff]
                  %1520 = vst [vmem:[%s1106 + $0xcd0] sm:$0xff] %v1519
                  %v1521 = vld [vmem:[%s1105 + $0x678] sm:$0xff]
                  %1522 = vst [vmem:[%s1106 + $0xcd8] sm:$0xff] %v1521
                  %v1523 = vld [vmem:[%s1105 + $0x680] sm:$0xff]
                  %1524 = vst [vmem:[%s1106 + $0xd00] sm:$0xff] %v1523
                  %v1525 = vld [vmem:[%s1105 + $0x688] sm:$0xff]
                  %1526 = vst [vmem:[%s1106 + $0xd08] sm:$0xff] %v1525
                  %v1527 = vld [vmem:[%s1105 + $0x690] sm:$0xff]
                  %1528 = vst [vmem:[%s1106 + $0xd10] sm:$0xff] %v1527
                  %v1529 = vld [vmem:[%s1105 + $0x698] sm:$0xff]
                  %1530 = vst [vmem:[%s1106 + $0xd18] sm:$0xff] %v1529
                  %v1531 = vld [vmem:[%s1105 + $0x6a0] sm:$0xff]
                  %1532 = vst [vmem:[%s1106 + $0xd40] sm:$0xff] %v1531
                  %v1533 = vld [vmem:[%s1105 + $0x6a8] sm:$0xff]
                  %1534 = vst [vmem:[%s1106 + $0xd48] sm:$0xff] %v1533
                  %v1535 = vld [vmem:[%s1105 + $0x6b0] sm:$0xff]
                  %1536 = vst [vmem:[%s1106 + $0xd50] sm:$0xff] %v1535
                  %v1537 = vld [vmem:[%s1105 + $0x6b8] sm:$0xff]
                  %1538 = vst [vmem:[%s1106 + $0xd58] sm:$0xff] %v1537
                  %v1539 = vld [vmem:[%s1105 + $0x6c0] sm:$0xff]
                  %1540 = vst [vmem:[%s1106 + $0xd80] sm:$0xff] %v1539
                  %v1541 = vld [vmem:[%s1105 + $0x6c8] sm:$0xff]
                  %1542 = vst [vmem:[%s1106 + $0xd88] sm:$0xff] %v1541
                  %v1543 = vld [vmem:[%s1105 + $0x6d0] sm:$0xff]
                  %1544 = vst [vmem:[%s1106 + $0xd90] sm:$0xff] %v1543
                  %v1545 = vld [vmem:[%s1105 + $0x6d8] sm:$0xff]
                  %1546 = vst [vmem:[%s1106 + $0xd98] sm:$0xff] %v1545
                  %v1547 = vld [vmem:[%s1105 + $0x6e0] sm:$0xff]
                  %1548 = vst [vmem:[%s1106 + $0xdc0] sm:$0xff] %v1547
                  %v1549 = vld [vmem:[%s1105 + $0x6e8] sm:$0xff]
                  %1550 = vst [vmem:[%s1106 + $0xdc8] sm:$0xff] %v1549
                  %v1551 = vld [vmem:[%s1105 + $0x6f0] sm:$0xff]
                  %1552 = vst [vmem:[%s1106 + $0xdd0] sm:$0xff] %v1551
                  %v1553 = vld [vmem:[%s1105 + $0x6f8] sm:$0xff]
                  %1554 = vst [vmem:[%s1106 + $0xdd8] sm:$0xff] %v1553
                  %v1555 = vld [vmem:[%s1105 + $0x700] sm:$0xff]
                  %1556 = vst [vmem:[%s1106 + $0xe00] sm:$0xff] %v1555
                  %v1557 = vld [vmem:[%s1105 + $0x708] sm:$0xff]
                  %1558 = vst [vmem:[%s1106 + $0xe08] sm:$0xff] %v1557
                  %v1559 = vld [vmem:[%s1105 + $0x710] sm:$0xff]
                  %1560 = vst [vmem:[%s1106 + $0xe10] sm:$0xff] %v1559
                  %v1561 = vld [vmem:[%s1105 + $0x718] sm:$0xff]
                  %1562 = vst [vmem:[%s1106 + $0xe18] sm:$0xff] %v1561
                  %v1563 = vld [vmem:[%s1105 + $0x720] sm:$0xff]
                  %1564 = vst [vmem:[%s1106 + $0xe40] sm:$0xff] %v1563
                  %v1565 = vld [vmem:[%s1105 + $0x728] sm:$0xff]
                  %1566 = vst [vmem:[%s1106 + $0xe48] sm:$0xff] %v1565
                  %v1567 = vld [vmem:[%s1105 + $0x730] sm:$0xff]
                  %1568 = vst [vmem:[%s1106 + $0xe50] sm:$0xff] %v1567
                  %v1569 = vld [vmem:[%s1105 + $0x738] sm:$0xff]
                  %1570 = vst [vmem:[%s1106 + $0xe58] sm:$0xff] %v1569
                $region56: #{tpu_custom_call.1} parent=50 // loop_footer
                  %s1104 = sadd.s32 1, %s1100
                $region57: #{tpu_custom_call.1} parent=50 // loop_footer_branch
                  %1099 = sbr.rel target = $region53
                $region58: #{tpu_custom_call.1} parent=50 // loop_exit
                  _
              $region51: #{tpu_custom_call.1} parent=35 // pred_fallthru
                _
              // Predicated region
              $region59: #{tpu_custom_call.1} parent=35 // pred_check
                _
              $region60: #{tpu_custom_call.1} parent=35 // pred_check_branch
                %1572 = sbr.rel target = $region62
              $region61: #{tpu_custom_call.1} parent=35 // pred_region
                _
              $region62: #{tpu_custom_call.1} parent=35 // pred_fallthru
                _
            $region36: #{tpu_custom_call.1} parent=31 // pred_fallthru
              _
            // Predicated region
            $region37: #{tpu_custom_call.1} parent=31 // pred_check
              _
            $region38: #{tpu_custom_call.1} parent=31 // pred_check_branch
              %622 = sbr.rel target = $region40
            $region39: #{tpu_custom_call.1} parent=31 // pred_region
              %s624 = ssub.s32 256, 1
              loop: start=0, step=1, limit=1
              $region41: #{tpu_custom_call.1} parent=39 // loop_pre_header
                _
              $region42: #{tpu_custom_call.1} parent=39 // loop_header
                %s626 = sphi 0, %s630
                %p627 = scmp.ge.s32.totalorder %s626, 1
                %s631 = sphi %s608, %s608
                %s632 = sphi %s616, %s616
              $region43: #{tpu_custom_call.1} parent=39 // loop_header_branch
                %629 = sbr.rel (%p627) target = $region47
              $region44: #{tpu_custom_call.1} parent=39 // loop_body
                %v633 = vld [vmem:[%s631] sm:%s624]
                %634 = vst [vmem:[%s632] sm:%s624] %v633
                %v635 = vld [vmem:[%s631 + $0x8] sm:%s624]
                %636 = vst [vmem:[%s632 + $0x8] sm:%s624] %v635
                %v637 = vld [vmem:[%s631 + $0x10] sm:%s624]
                %638 = vst [vmem:[%s632 + $0x10] sm:%s624] %v637
                %v639 = vld [vmem:[%s631 + $0x18] sm:%s624]
                %640 = vst [vmem:[%s632 + $0x18] sm:%s624] %v639
                %v641 = vld [vmem:[%s631 + $0x20] sm:%s624]
                %642 = vst [vmem:[%s632 + $0x40] sm:%s624] %v641
                %v643 = vld [vmem:[%s631 + $0x28] sm:%s624]
                %644 = vst [vmem:[%s632 + $0x48] sm:%s624] %v643
                %v645 = vld [vmem:[%s631 + $0x30] sm:%s624]
                %646 = vst [vmem:[%s632 + $0x50] sm:%s624] %v645
                %v647 = vld [vmem:[%s631 + $0x38] sm:%s624]
                %648 = vst [vmem:[%s632 + $0x58] sm:%s624] %v647
                %v649 = vld [vmem:[%s631 + $0x40] sm:%s624]
                %650 = vst [vmem:[%s632 + $0x80] sm:%s624] %v649
                %v651 = vld [vmem:[%s631 + $0x48] sm:%s624]
                %652 = vst [vmem:[%s632 + $0x88] sm:%s624] %v651
                %v653 = vld [vmem:[%s631 + $0x50] sm:%s624]
                %654 = vst [vmem:[%s632 + $0x90] sm:%s624] %v653
                %v655 = vld [vmem:[%s631 + $0x58] sm:%s624]
                %656 = vst [vmem:[%s632 + $0x98] sm:%s624] %v655
                %v657 = vld [vmem:[%s631 + $0x60] sm:%s624]
                %658 = vst [vmem:[%s632 + $0xc0] sm:%s624] %v657
                %v659 = vld [vmem:[%s631 + $0x68] sm:%s624]
                %660 = vst [vmem:[%s632 + $0xc8] sm:%s624] %v659
                %v661 = vld [vmem:[%s631 + $0x70] sm:%s624]
                %662 = vst [vmem:[%s632 + $0xd0] sm:%s624] %v661
                %v663 = vld [vmem:[%s631 + $0x78] sm:%s624]
                %664 = vst [vmem:[%s632 + $0xd8] sm:%s624] %v663
                %v665 = vld [vmem:[%s631 + $0x80] sm:%s624]
                %666 = vst [vmem:[%s632 + $0x100] sm:%s624] %v665
                %v667 = vld [vmem:[%s631 + $0x88] sm:%s624]
                %668 = vst [vmem:[%s632 + $0x108] sm:%s624] %v667
                %v669 = vld [vmem:[%s631 + $0x90] sm:%s624]
                %670 = vst [vmem:[%s632 + $0x110] sm:%s624] %v669
                %v671 = vld [vmem:[%s631 + $0x98] sm:%s624]
                %672 = vst [vmem:[%s632 + $0x118] sm:%s624] %v671
                %v673 = vld [vmem:[%s631 + $0xa0] sm:%s624]
                %674 = vst [vmem:[%s632 + $0x140] sm:%s624] %v673
                %v675 = vld [vmem:[%s631 + $0xa8] sm:%s624]
                %676 = vst [vmem:[%s632 + $0x148] sm:%s624] %v675
                %v677 = vld [vmem:[%s631 + $0xb0] sm:%s624]
                %678 = vst [vmem:[%s632 + $0x150] sm:%s624] %v677
                %v679 = vld [vmem:[%s631 + $0xb8] sm:%s624]
                %680 = vst [vmem:[%s632 + $0x158] sm:%s624] %v679
                %v681 = vld [vmem:[%s631 + $0xc0] sm:%s624]
                %682 = vst [vmem:[%s632 + $0x180] sm:%s624] %v681
                %v683 = vld [vmem:[%s631 + $0xc8] sm:%s624]
                %684 = vst [vmem:[%s632 + $0x188] sm:%s624] %v683
                %v685 = vld [vmem:[%s631 + $0xd0] sm:%s624]
                %686 = vst [vmem:[%s632 + $0x190] sm:%s624] %v685
                %v687 = vld [vmem:[%s631 + $0xd8] sm:%s624]
                %688 = vst [vmem:[%s632 + $0x198] sm:%s624] %v687
                %v689 = vld [vmem:[%s631 + $0xe0] sm:%s624]
                %690 = vst [vmem:[%s632 + $0x1c0] sm:%s624] %v689
                %v691 = vld [vmem:[%s631 + $0xe8] sm:%s624]
                %692 = vst [vmem:[%s632 + $0x1c8] sm:%s624] %v691
                %v693 = vld [vmem:[%s631 + $0xf0] sm:%s624]
                %694 = vst [vmem:[%s632 + $0x1d0] sm:%s624] %v693
                %v695 = vld [vmem:[%s631 + $0xf8] sm:%s624]
                %696 = vst [vmem:[%s632 + $0x1d8] sm:%s624] %v695
                %v697 = vld [vmem:[%s631 + $0x100] sm:%s624]
                %698 = vst [vmem:[%s632 + $0x200] sm:%s624] %v697
                %v699 = vld [vmem:[%s631 + $0x108] sm:%s624]
                %700 = vst [vmem:[%s632 + $0x208] sm:%s624] %v699
                %v701 = vld [vmem:[%s631 + $0x110] sm:%s624]
                %702 = vst [vmem:[%s632 + $0x210] sm:%s624] %v701
                %v703 = vld [vmem:[%s631 + $0x118] sm:%s624]
                %704 = vst [vmem:[%s632 + $0x218] sm:%s624] %v703
                %v705 = vld [vmem:[%s631 + $0x120] sm:%s624]
                %706 = vst [vmem:[%s632 + $0x240] sm:%s624] %v705
                %v707 = vld [vmem:[%s631 + $0x128] sm:%s624]
                %708 = vst [vmem:[%s632 + $0x248] sm:%s624] %v707
                %v709 = vld [vmem:[%s631 + $0x130] sm:%s624]
                %710 = vst [vmem:[%s632 + $0x250] sm:%s624] %v709
                %v711 = vld [vmem:[%s631 + $0x138] sm:%s624]
                %712 = vst [vmem:[%s632 + $0x258] sm:%s624] %v711
                %v713 = vld [vmem:[%s631 + $0x140] sm:%s624]
                %714 = vst [vmem:[%s632 + $0x280] sm:%s624] %v713
                %v715 = vld [vmem:[%s631 + $0x148] sm:%s624]
                %716 = vst [vmem:[%s632 + $0x288] sm:%s624] %v715
                %v717 = vld [vmem:[%s631 + $0x150] sm:%s624]
                %718 = vst [vmem:[%s632 + $0x290] sm:%s624] %v717
                %v719 = vld [vmem:[%s631 + $0x158] sm:%s624]
                %720 = vst [vmem:[%s632 + $0x298] sm:%s624] %v719
                %v721 = vld [vmem:[%s631 + $0x160] sm:%s624]
                %722 = vst [vmem:[%s632 + $0x2c0] sm:%s624] %v721
                %v723 = vld [vmem:[%s631 + $0x168] sm:%s624]
                %724 = vst [vmem:[%s632 + $0x2c8] sm:%s624] %v723
                %v725 = vld [vmem:[%s631 + $0x170] sm:%s624]
                %726 = vst [vmem:[%s632 + $0x2d0] sm:%s624] %v725
                %v727 = vld [vmem:[%s631 + $0x178] sm:%s624]
                %728 = vst [vmem:[%s632 + $0x2d8] sm:%s624] %v727
                %v729 = vld [vmem:[%s631 + $0x180] sm:%s624]
                %730 = vst [vmem:[%s632 + $0x300] sm:%s624] %v729
                %v731 = vld [vmem:[%s631 + $0x188] sm:%s624]
                %732 = vst [vmem:[%s632 + $0x308] sm:%s624] %v731
                %v733 = vld [vmem:[%s631 + $0x190] sm:%s624]
                %734 = vst [vmem:[%s632 + $0x310] sm:%s624] %v733
                %v735 = vld [vmem:[%s631 + $0x198] sm:%s624]
                %736 = vst [vmem:[%s632 + $0x318] sm:%s624] %v735
                %v737 = vld [vmem:[%s631 + $0x1a0] sm:%s624]
                %738 = vst [vmem:[%s632 + $0x340] sm:%s624] %v737
                %v739 = vld [vmem:[%s631 + $0x1a8] sm:%s624]
                %740 = vst [vmem:[%s632 + $0x348] sm:%s624] %v739
                %v741 = vld [vmem:[%s631 + $0x1b0] sm:%s624]
                %742 = vst [vmem:[%s632 + $0x350] sm:%s624] %v741
                %v743 = vld [vmem:[%s631 + $0x1b8] sm:%s624]
                %744 = vst [vmem:[%s632 + $0x358] sm:%s624] %v743
                %v745 = vld [vmem:[%s631 + $0x1c0] sm:%s624]
                %746 = vst [vmem:[%s632 + $0x380] sm:%s624] %v745
                %v747 = vld [vmem:[%s631 + $0x1c8] sm:%s624]
                %748 = vst [vmem:[%s632 + $0x388] sm:%s624] %v747
                %v749 = vld [vmem:[%s631 + $0x1d0] sm:%s624]
                %750 = vst [vmem:[%s632 + $0x390] sm:%s624] %v749
                %v751 = vld [vmem:[%s631 + $0x1d8] sm:%s624]
                %752 = vst [vmem:[%s632 + $0x398] sm:%s624] %v751
                %v753 = vld [vmem:[%s631 + $0x1e0] sm:%s624]
                %754 = vst [vmem:[%s632 + $0x3c0] sm:%s624] %v753
                %v755 = vld [vmem:[%s631 + $0x1e8] sm:%s624]
                %756 = vst [vmem:[%s632 + $0x3c8] sm:%s624] %v755
                %v757 = vld [vmem:[%s631 + $0x1f0] sm:%s624]
                %758 = vst [vmem:[%s632 + $0x3d0] sm:%s624] %v757
                %v759 = vld [vmem:[%s631 + $0x1f8] sm:%s624]
                %760 = vst [vmem:[%s632 + $0x3d8] sm:%s624] %v759
                %v761 = vld [vmem:[%s631 + $0x200] sm:%s624]
                %762 = vst [vmem:[%s632 + $0x400] sm:%s624] %v761
                %v763 = vld [vmem:[%s631 + $0x208] sm:%s624]
                %764 = vst [vmem:[%s632 + $0x408] sm:%s624] %v763
                %v765 = vld [vmem:[%s631 + $0x210] sm:%s624]
                %766 = vst [vmem:[%s632 + $0x410] sm:%s624] %v765
                %v767 = vld [vmem:[%s631 + $0x218] sm:%s624]
                %768 = vst [vmem:[%s632 + $0x418] sm:%s624] %v767
                %v769 = vld [vmem:[%s631 + $0x220] sm:%s624]
                %770 = vst [vmem:[%s632 + $0x440] sm:%s624] %v769
                %v771 = vld [vmem:[%s631 + $0x228] sm:%s624]
                %772 = vst [vmem:[%s632 + $0x448] sm:%s624] %v771
                %v773 = vld [vmem:[%s631 + $0x230] sm:%s624]
                %774 = vst [vmem:[%s632 + $0x450] sm:%s624] %v773
                %v775 = vld [vmem:[%s631 + $0x238] sm:%s624]
                %776 = vst [vmem:[%s632 + $0x458] sm:%s624] %v775
                %v777 = vld [vmem:[%s631 + $0x240] sm:%s624]
                %778 = vst [vmem:[%s632 + $0x480] sm:%s624] %v777
                %v779 = vld [vmem:[%s631 + $0x248] sm:%s624]
                %780 = vst [vmem:[%s632 + $0x488] sm:%s624] %v779
                %v781 = vld [vmem:[%s631 + $0x250] sm:%s624]
                %782 = vst [vmem:[%s632 + $0x490] sm:%s624] %v781
                %v783 = vld [vmem:[%s631 + $0x258] sm:%s624]
                %784 = vst [vmem:[%s632 + $0x498] sm:%s624] %v783
                %v785 = vld [vmem:[%s631 + $0x260] sm:%s624]
                %786 = vst [vmem:[%s632 + $0x4c0] sm:%s624] %v785
                %v787 = vld [vmem:[%s631 + $0x268] sm:%s624]
                %788 = vst [vmem:[%s632 + $0x4c8] sm:%s624] %v787
                %v789 = vld [vmem:[%s631 + $0x270] sm:%s624]
                %790 = vst [vmem:[%s632 + $0x4d0] sm:%s624] %v789
                %v791 = vld [vmem:[%s631 + $0x278] sm:%s624]
                %792 = vst [vmem:[%s632 + $0x4d8] sm:%s624] %v791
                %v793 = vld [vmem:[%s631 + $0x280] sm:%s624]
                %794 = vst [vmem:[%s632 + $0x500] sm:%s624] %v793
                %v795 = vld [vmem:[%s631 + $0x288] sm:%s624]
                %796 = vst [vmem:[%s632 + $0x508] sm:%s624] %v795
                %v797 = vld [vmem:[%s631 + $0x290] sm:%s624]
                %798 = vst [vmem:[%s632 + $0x510] sm:%s624] %v797
                %v799 = vld [vmem:[%s631 + $0x298] sm:%s624]
                %800 = vst [vmem:[%s632 + $0x518] sm:%s624] %v799
                %v801 = vld [vmem:[%s631 + $0x2a0] sm:%s624]
                %802 = vst [vmem:[%s632 + $0x540] sm:%s624] %v801
                %v803 = vld [vmem:[%s631 + $0x2a8] sm:%s624]
                %804 = vst [vmem:[%s632 + $0x548] sm:%s624] %v803
                %v805 = vld [vmem:[%s631 + $0x2b0] sm:%s624]
                %806 = vst [vmem:[%s632 + $0x550] sm:%s624] %v805
                %v807 = vld [vmem:[%s631 + $0x2b8] sm:%s624]
                %808 = vst [vmem:[%s632 + $0x558] sm:%s624] %v807
                %v809 = vld [vmem:[%s631 + $0x2c0] sm:%s624]
                %810 = vst [vmem:[%s632 + $0x580] sm:%s624] %v809
                %v811 = vld [vmem:[%s631 + $0x2c8] sm:%s624]
                %812 = vst [vmem:[%s632 + $0x588] sm:%s624] %v811
                %v813 = vld [vmem:[%s631 + $0x2d0] sm:%s624]
                %814 = vst [vmem:[%s632 + $0x590] sm:%s624] %v813
                %v815 = vld [vmem:[%s631 + $0x2d8] sm:%s624]
                %816 = vst [vmem:[%s632 + $0x598] sm:%s624] %v815
                %v817 = vld [vmem:[%s631 + $0x2e0] sm:%s624]
                %818 = vst [vmem:[%s632 + $0x5c0] sm:%s624] %v817
                %v819 = vld [vmem:[%s631 + $0x2e8] sm:%s624]
                %820 = vst [vmem:[%s632 + $0x5c8] sm:%s624] %v819
                %v821 = vld [vmem:[%s631 + $0x2f0] sm:%s624]
                %822 = vst [vmem:[%s632 + $0x5d0] sm:%s624] %v821
                %v823 = vld [vmem:[%s631 + $0x2f8] sm:%s624]
                %824 = vst [vmem:[%s632 + $0x5d8] sm:%s624] %v823
                %v825 = vld [vmem:[%s631 + $0x300] sm:%s624]
                %826 = vst [vmem:[%s632 + $0x600] sm:%s624] %v825
                %v827 = vld [vmem:[%s631 + $0x308] sm:%s624]
                %828 = vst [vmem:[%s632 + $0x608] sm:%s624] %v827
                %v829 = vld [vmem:[%s631 + $0x310] sm:%s624]
                %830 = vst [vmem:[%s632 + $0x610] sm:%s624] %v829
                %v831 = vld [vmem:[%s631 + $0x318] sm:%s624]
                %832 = vst [vmem:[%s632 + $0x618] sm:%s624] %v831
                %v833 = vld [vmem:[%s631 + $0x320] sm:%s624]
                %834 = vst [vmem:[%s632 + $0x640] sm:%s624] %v833
                %v835 = vld [vmem:[%s631 + $0x328] sm:%s624]
                %836 = vst [vmem:[%s632 + $0x648] sm:%s624] %v835
                %v837 = vld [vmem:[%s631 + $0x330] sm:%s624]
                %838 = vst [vmem:[%s632 + $0x650] sm:%s624] %v837
                %v839 = vld [vmem:[%s631 + $0x338] sm:%s624]
                %840 = vst [vmem:[%s632 + $0x658] sm:%s624] %v839
                %v841 = vld [vmem:[%s631 + $0x340] sm:%s624]
                %842 = vst [vmem:[%s632 + $0x680] sm:%s624] %v841
                %v843 = vld [vmem:[%s631 + $0x348] sm:%s624]
                %844 = vst [vmem:[%s632 + $0x688] sm:%s624] %v843
                %v845 = vld [vmem:[%s631 + $0x350] sm:%s624]
                %846 = vst [vmem:[%s632 + $0x690] sm:%s624] %v845
                %v847 = vld [vmem:[%s631 + $0x358] sm:%s624]
                %848 = vst [vmem:[%s632 + $0x698] sm:%s624] %v847
                %v849 = vld [vmem:[%s631 + $0x360] sm:%s624]
                %850 = vst [vmem:[%s632 + $0x6c0] sm:%s624] %v849
                %v851 = vld [vmem:[%s631 + $0x368] sm:%s624]
                %852 = vst [vmem:[%s632 + $0x6c8] sm:%s624] %v851
                %v853 = vld [vmem:[%s631 + $0x370] sm:%s624]
                %854 = vst [vmem:[%s632 + $0x6d0] sm:%s624] %v853
                %v855 = vld [vmem:[%s631 + $0x378] sm:%s624]
                %856 = vst [vmem:[%s632 + $0x6d8] sm:%s624] %v855
                %v857 = vld [vmem:[%s631 + $0x380] sm:%s624]
                %858 = vst [vmem:[%s632 + $0x700] sm:%s624] %v857
                %v859 = vld [vmem:[%s631 + $0x388] sm:%s624]
                %860 = vst [vmem:[%s632 + $0x708] sm:%s624] %v859
                %v861 = vld [vmem:[%s631 + $0x390] sm:%s624]
                %862 = vst [vmem:[%s632 + $0x710] sm:%s624] %v861
                %v863 = vld [vmem:[%s631 + $0x398] sm:%s624]
                %864 = vst [vmem:[%s632 + $0x718] sm:%s624] %v863
                %v865 = vld [vmem:[%s631 + $0x3a0] sm:%s624]
                %866 = vst [vmem:[%s632 + $0x740] sm:%s624] %v865
                %v867 = vld [vmem:[%s631 + $0x3a8] sm:%s624]
                %868 = vst [vmem:[%s632 + $0x748] sm:%s624] %v867
                %v869 = vld [vmem:[%s631 + $0x3b0] sm:%s624]
                %870 = vst [vmem:[%s632 + $0x750] sm:%s624] %v869
                %v871 = vld [vmem:[%s631 + $0x3b8] sm:%s624]
                %872 = vst [vmem:[%s632 + $0x758] sm:%s624] %v871
                %v873 = vld [vmem:[%s631 + $0x3c0] sm:%s624]
                %874 = vst [vmem:[%s632 + $0x780] sm:%s624] %v873
                %v875 = vld [vmem:[%s631 + $0x3c8] sm:%s624]
                %876 = vst [vmem:[%s632 + $0x788] sm:%s624] %v875
                %v877 = vld [vmem:[%s631 + $0x3d0] sm:%s624]
                %878 = vst [vmem:[%s632 + $0x790] sm:%s624] %v877
                %v879 = vld [vmem:[%s631 + $0x3d8] sm:%s624]
                %880 = vst [vmem:[%s632 + $0x798] sm:%s624] %v879
                %v881 = vld [vmem:[%s631 + $0x3e0] sm:%s624]
                %882 = vst [vmem:[%s632 + $0x7c0] sm:%s624] %v881
                %v883 = vld [vmem:[%s631 + $0x3e8] sm:%s624]
                %884 = vst [vmem:[%s632 + $0x7c8] sm:%s624] %v883
                %v885 = vld [vmem:[%s631 + $0x3f0] sm:%s624]
                %886 = vst [vmem:[%s632 + $0x7d0] sm:%s624] %v885
                %v887 = vld [vmem:[%s631 + $0x3f8] sm:%s624]
                %888 = vst [vmem:[%s632 + $0x7d8] sm:%s624] %v887
                %v889 = vld [vmem:[%s631 + $0x400] sm:%s624]
                %890 = vst [vmem:[%s632 + $0x800] sm:%s624] %v889
                %v891 = vld [vmem:[%s631 + $0x408] sm:%s624]
                %892 = vst [vmem:[%s632 + $0x808] sm:%s624] %v891
                %v893 = vld [vmem:[%s631 + $0x410] sm:%s624]
                %894 = vst [vmem:[%s632 + $0x810] sm:%s624] %v893
                %v895 = vld [vmem:[%s631 + $0x418] sm:%s624]
                %896 = vst [vmem:[%s632 + $0x818] sm:%s624] %v895
                %v897 = vld [vmem:[%s631 + $0x420] sm:%s624]
                %898 = vst [vmem:[%s632 + $0x840] sm:%s624] %v897
                %v899 = vld [vmem:[%s631 + $0x428] sm:%s624]
                %900 = vst [vmem:[%s632 + $0x848] sm:%s624] %v899
                %v901 = vld [vmem:[%s631 + $0x430] sm:%s624]
                %902 = vst [vmem:[%s632 + $0x850] sm:%s624] %v901
                %v903 = vld [vmem:[%s631 + $0x438] sm:%s624]
                %904 = vst [vmem:[%s632 + $0x858] sm:%s624] %v903
                %v905 = vld [vmem:[%s631 + $0x440] sm:%s624]
                %906 = vst [vmem:[%s632 + $0x880] sm:%s624] %v905
                %v907 = vld [vmem:[%s631 + $0x448] sm:%s624]
                %908 = vst [vmem:[%s632 + $0x888] sm:%s624] %v907
                %v909 = vld [vmem:[%s631 + $0x450] sm:%s624]
                %910 = vst [vmem:[%s632 + $0x890] sm:%s624] %v909
                %v911 = vld [vmem:[%s631 + $0x458] sm:%s624]
                %912 = vst [vmem:[%s632 + $0x898] sm:%s624] %v911
                %v913 = vld [vmem:[%s631 + $0x460] sm:%s624]
                %914 = vst [vmem:[%s632 + $0x8c0] sm:%s624] %v913
                %v915 = vld [vmem:[%s631 + $0x468] sm:%s624]
                %916 = vst [vmem:[%s632 + $0x8c8] sm:%s624] %v915
                %v917 = vld [vmem:[%s631 + $0x470] sm:%s624]
                %918 = vst [vmem:[%s632 + $0x8d0] sm:%s624] %v917
                %v919 = vld [vmem:[%s631 + $0x478] sm:%s624]
                %920 = vst [vmem:[%s632 + $0x8d8] sm:%s624] %v919
                %v921 = vld [vmem:[%s631 + $0x480] sm:%s624]
                %922 = vst [vmem:[%s632 + $0x900] sm:%s624] %v921
                %v923 = vld [vmem:[%s631 + $0x488] sm:%s624]
                %924 = vst [vmem:[%s632 + $0x908] sm:%s624] %v923
                %v925 = vld [vmem:[%s631 + $0x490] sm:%s624]
                %926 = vst [vmem:[%s632 + $0x910] sm:%s624] %v925
                %v927 = vld [vmem:[%s631 + $0x498] sm:%s624]
                %928 = vst [vmem:[%s632 + $0x918] sm:%s624] %v927
                %v929 = vld [vmem:[%s631 + $0x4a0] sm:%s624]
                %930 = vst [vmem:[%s632 + $0x940] sm:%s624] %v929
                %v931 = vld [vmem:[%s631 + $0x4a8] sm:%s624]
                %932 = vst [vmem:[%s632 + $0x948] sm:%s624] %v931
                %v933 = vld [vmem:[%s631 + $0x4b0] sm:%s624]
                %934 = vst [vmem:[%s632 + $0x950] sm:%s624] %v933
                %v935 = vld [vmem:[%s631 + $0x4b8] sm:%s624]
                %936 = vst [vmem:[%s632 + $0x958] sm:%s624] %v935
                %v937 = vld [vmem:[%s631 + $0x4c0] sm:%s624]
                %938 = vst [vmem:[%s632 + $0x980] sm:%s624] %v937
                %v939 = vld [vmem:[%s631 + $0x4c8] sm:%s624]
                %940 = vst [vmem:[%s632 + $0x988] sm:%s624] %v939
                %v941 = vld [vmem:[%s631 + $0x4d0] sm:%s624]
                %942 = vst [vmem:[%s632 + $0x990] sm:%s624] %v941
                %v943 = vld [vmem:[%s631 + $0x4d8] sm:%s624]
                %944 = vst [vmem:[%s632 + $0x998] sm:%s624] %v943
                %v945 = vld [vmem:[%s631 + $0x4e0] sm:%s624]
                %946 = vst [vmem:[%s632 + $0x9c0] sm:%s624] %v945
                %v947 = vld [vmem:[%s631 + $0x4e8] sm:%s624]
                %948 = vst [vmem:[%s632 + $0x9c8] sm:%s624] %v947
                %v949 = vld [vmem:[%s631 + $0x4f0] sm:%s624]
                %950 = vst [vmem:[%s632 + $0x9d0] sm:%s624] %v949
                %v951 = vld [vmem:[%s631 + $0x4f8] sm:%s624]
                %952 = vst [vmem:[%s632 + $0x9d8] sm:%s624] %v951
                %v953 = vld [vmem:[%s631 + $0x500] sm:%s624]
                %954 = vst [vmem:[%s632 + $0xa00] sm:%s624] %v953
                %v955 = vld [vmem:[%s631 + $0x508] sm:%s624]
                %956 = vst [vmem:[%s632 + $0xa08] sm:%s624] %v955
                %v957 = vld [vmem:[%s631 + $0x510] sm:%s624]
                %958 = vst [vmem:[%s632 + $0xa10] sm:%s624] %v957
                %v959 = vld [vmem:[%s631 + $0x518] sm:%s624]
                %960 = vst [vmem:[%s632 + $0xa18] sm:%s624] %v959
                %v961 = vld [vmem:[%s631 + $0x520] sm:%s624]
                %962 = vst [vmem:[%s632 + $0xa40] sm:%s624] %v961
                %v963 = vld [vmem:[%s631 + $0x528] sm:%s624]
                %964 = vst [vmem:[%s632 + $0xa48] sm:%s624] %v963
                %v965 = vld [vmem:[%s631 + $0x530] sm:%s624]
                %966 = vst [vmem:[%s632 + $0xa50] sm:%s624] %v965
                %v967 = vld [vmem:[%s631 + $0x538] sm:%s624]
                %968 = vst [vmem:[%s632 + $0xa58] sm:%s624] %v967
                %v969 = vld [vmem:[%s631 + $0x540] sm:%s624]
                %970 = vst [vmem:[%s632 + $0xa80] sm:%s624] %v969
                %v971 = vld [vmem:[%s631 + $0x548] sm:%s624]
                %972 = vst [vmem:[%s632 + $0xa88] sm:%s624] %v971
                %v973 = vld [vmem:[%s631 + $0x550] sm:%s624]
                %974 = vst [vmem:[%s632 + $0xa90] sm:%s624] %v973
                %v975 = vld [vmem:[%s631 + $0x558] sm:%s624]
                %976 = vst [vmem:[%s632 + $0xa98] sm:%s624] %v975
                %v977 = vld [vmem:[%s631 + $0x560] sm:%s624]
                %978 = vst [vmem:[%s632 + $0xac0] sm:%s624] %v977
                %v979 = vld [vmem:[%s631 + $0x568] sm:%s624]
                %980 = vst [vmem:[%s632 + $0xac8] sm:%s624] %v979
                %v981 = vld [vmem:[%s631 + $0x570] sm:%s624]
                %982 = vst [vmem:[%s632 + $0xad0] sm:%s624] %v981
                %v983 = vld [vmem:[%s631 + $0x578] sm:%s624]
                %984 = vst [vmem:[%s632 + $0xad8] sm:%s624] %v983
                %v985 = vld [vmem:[%s631 + $0x580] sm:%s624]
                %986 = vst [vmem:[%s632 + $0xb00] sm:%s624] %v985
                %v987 = vld [vmem:[%s631 + $0x588] sm:%s624]
                %988 = vst [vmem:[%s632 + $0xb08] sm:%s624] %v987
                %v989 = vld [vmem:[%s631 + $0x590] sm:%s624]
                %990 = vst [vmem:[%s632 + $0xb10] sm:%s624] %v989
                %v991 = vld [vmem:[%s631 + $0x598] sm:%s624]
                %992 = vst [vmem:[%s632 + $0xb18] sm:%s624] %v991
                %v993 = vld [vmem:[%s631 + $0x5a0] sm:%s624]
                %994 = vst [vmem:[%s632 + $0xb40] sm:%s624] %v993
                %v995 = vld [vmem:[%s631 + $0x5a8] sm:%s624]
                %996 = vst [vmem:[%s632 + $0xb48] sm:%s624] %v995
                %v997 = vld [vmem:[%s631 + $0x5b0] sm:%s624]
                %998 = vst [vmem:[%s632 + $0xb50] sm:%s624] %v997
                %v999 = vld [vmem:[%s631 + $0x5b8] sm:%s624]
                %1000 = vst [vmem:[%s632 + $0xb58] sm:%s624] %v999
                %v1001 = vld [vmem:[%s631 + $0x5c0] sm:%s624]
                %1002 = vst [vmem:[%s632 + $0xb80] sm:%s624] %v1001
                %v1003 = vld [vmem:[%s631 + $0x5c8] sm:%s624]
                %1004 = vst [vmem:[%s632 + $0xb88] sm:%s624] %v1003
                %v1005 = vld [vmem:[%s631 + $0x5d0] sm:%s624]
                %1006 = vst [vmem:[%s632 + $0xb90] sm:%s624] %v1005
                %v1007 = vld [vmem:[%s631 + $0x5d8] sm:%s624]
                %1008 = vst [vmem:[%s632 + $0xb98] sm:%s624] %v1007
                %v1009 = vld [vmem:[%s631 + $0x5e0] sm:%s624]
                %1010 = vst [vmem:[%s632 + $0xbc0] sm:%s624] %v1009
                %v1011 = vld [vmem:[%s631 + $0x5e8] sm:%s624]
                %1012 = vst [vmem:[%s632 + $0xbc8] sm:%s624] %v1011
                %v1013 = vld [vmem:[%s631 + $0x5f0] sm:%s624]
                %1014 = vst [vmem:[%s632 + $0xbd0] sm:%s624] %v1013
                %v1015 = vld [vmem:[%s631 + $0x5f8] sm:%s624]
                %1016 = vst [vmem:[%s632 + $0xbd8] sm:%s624] %v1015
                %v1017 = vld [vmem:[%s631 + $0x600] sm:%s624]
                %1018 = vst [vmem:[%s632 + $0xc00] sm:%s624] %v1017
                %v1019 = vld [vmem:[%s631 + $0x608] sm:%s624]
                %1020 = vst [vmem:[%s632 + $0xc08] sm:%s624] %v1019
                %v1021 = vld [vmem:[%s631 + $0x610] sm:%s624]
                %1022 = vst [vmem:[%s632 + $0xc10] sm:%s624] %v1021
                %v1023 = vld [vmem:[%s631 + $0x618] sm:%s624]
                %1024 = vst [vmem:[%s632 + $0xc18] sm:%s624] %v1023
                %v1025 = vld [vmem:[%s631 + $0x620] sm:%s624]
                %1026 = vst [vmem:[%s632 + $0xc40] sm:%s624] %v1025
                %v1027 = vld [vmem:[%s631 + $0x628] sm:%s624]
                %1028 = vst [vmem:[%s632 + $0xc48] sm:%s624] %v1027
                %v1029 = vld [vmem:[%s631 + $0x630] sm:%s624]
                %1030 = vst [vmem:[%s632 + $0xc50] sm:%s624] %v1029
                %v1031 = vld [vmem:[%s631 + $0x638] sm:%s624]
                %1032 = vst [vmem:[%s632 + $0xc58] sm:%s624] %v1031
                %v1033 = vld [vmem:[%s631 + $0x640] sm:%s624]
                %1034 = vst [vmem:[%s632 + $0xc80] sm:%s624] %v1033
                %v1035 = vld [vmem:[%s631 + $0x648] sm:%s624]
                %1036 = vst [vmem:[%s632 + $0xc88] sm:%s624] %v1035
                %v1037 = vld [vmem:[%s631 + $0x650] sm:%s624]
                %1038 = vst [vmem:[%s632 + $0xc90] sm:%s624] %v1037
                %v1039 = vld [vmem:[%s631 + $0x658] sm:%s624]
                %1040 = vst [vmem:[%s632 + $0xc98] sm:%s624] %v1039
                %v1041 = vld [vmem:[%s631 + $0x660] sm:%s624]
                %1042 = vst [vmem:[%s632 + $0xcc0] sm:%s624] %v1041
                %v1043 = vld [vmem:[%s631 + $0x668] sm:%s624]
                %1044 = vst [vmem:[%s632 + $0xcc8] sm:%s624] %v1043
                %v1045 = vld [vmem:[%s631 + $0x670] sm:%s624]
                %1046 = vst [vmem:[%s632 + $0xcd0] sm:%s624] %v1045
                %v1047 = vld [vmem:[%s631 + $0x678] sm:%s624]
                %1048 = vst [vmem:[%s632 + $0xcd8] sm:%s624] %v1047
                %v1049 = vld [vmem:[%s631 + $0x680] sm:%s624]
                %1050 = vst [vmem:[%s632 + $0xd00] sm:%s624] %v1049
                %v1051 = vld [vmem:[%s631 + $0x688] sm:%s624]
                %1052 = vst [vmem:[%s632 + $0xd08] sm:%s624] %v1051
                %v1053 = vld [vmem:[%s631 + $0x690] sm:%s624]
                %1054 = vst [vmem:[%s632 + $0xd10] sm:%s624] %v1053
                %v1055 = vld [vmem:[%s631 + $0x698] sm:%s624]
                %1056 = vst [vmem:[%s632 + $0xd18] sm:%s624] %v1055
                %v1057 = vld [vmem:[%s631 + $0x6a0] sm:%s624]
                %1058 = vst [vmem:[%s632 + $0xd40] sm:%s624] %v1057
                %v1059 = vld [vmem:[%s631 + $0x6a8] sm:%s624]
                %1060 = vst [vmem:[%s632 + $0xd48] sm:%s624] %v1059
                %v1061 = vld [vmem:[%s631 + $0x6b0] sm:%s624]
                %1062 = vst [vmem:[%s632 + $0xd50] sm:%s624] %v1061
                %v1063 = vld [vmem:[%s631 + $0x6b8] sm:%s624]
                %1064 = vst [vmem:[%s632 + $0xd58] sm:%s624] %v1063
                %v1065 = vld [vmem:[%s631 + $0x6c0] sm:%s624]
                %1066 = vst [vmem:[%s632 + $0xd80] sm:%s624] %v1065
                %v1067 = vld [vmem:[%s631 + $0x6c8] sm:%s624]
                %1068 = vst [vmem:[%s632 + $0xd88] sm:%s624] %v1067
                %v1069 = vld [vmem:[%s631 + $0x6d0] sm:%s624]
                %1070 = vst [vmem:[%s632 + $0xd90] sm:%s624] %v1069
                %v1071 = vld [vmem:[%s631 + $0x6d8] sm:%s624]
                %1072 = vst [vmem:[%s632 + $0xd98] sm:%s624] %v1071
                %v1073 = vld [vmem:[%s631 + $0x6e0] sm:%s624]
                %1074 = vst [vmem:[%s632 + $0xdc0] sm:%s624] %v1073
                %v1075 = vld [vmem:[%s631 + $0x6e8] sm:%s624]
                %1076 = vst [vmem:[%s632 + $0xdc8] sm:%s624] %v1075
                %v1077 = vld [vmem:[%s631 + $0x6f0] sm:%s624]
                %1078 = vst [vmem:[%s632 + $0xdd0] sm:%s624] %v1077
                %v1079 = vld [vmem:[%s631 + $0x6f8] sm:%s624]
                %1080 = vst [vmem:[%s632 + $0xdd8] sm:%s624] %v1079
                %v1081 = vld [vmem:[%s631 + $0x700] sm:%s624]
                %1082 = vst [vmem:[%s632 + $0xe00] sm:%s624] %v1081
                %v1083 = vld [vmem:[%s631 + $0x708] sm:%s624]
                %1084 = vst [vmem:[%s632 + $0xe08] sm:%s624] %v1083
                %v1085 = vld [vmem:[%s631 + $0x710] sm:%s624]
                %1086 = vst [vmem:[%s632 + $0xe10] sm:%s624] %v1085
                %v1087 = vld [vmem:[%s631 + $0x718] sm:%s624]
                %1088 = vst [vmem:[%s632 + $0xe18] sm:%s624] %v1087
                %v1089 = vld [vmem:[%s631 + $0x720] sm:%s624]
                %1090 = vst [vmem:[%s632 + $0xe40] sm:%s624] %v1089
                %v1091 = vld [vmem:[%s631 + $0x728] sm:%s624]
                %1092 = vst [vmem:[%s632 + $0xe48] sm:%s624] %v1091
                %v1093 = vld [vmem:[%s631 + $0x730] sm:%s624]
                %1094 = vst [vmem:[%s632 + $0xe50] sm:%s624] %v1093
                %v1095 = vld [vmem:[%s631 + $0x738] sm:%s624]
                %1096 = vst [vmem:[%s632 + $0xe58] sm:%s624] %v1095
              $region45: #{tpu_custom_call.1} parent=39 // loop_footer
                %s630 = sadd.s32 1, %s626
              $region46: #{tpu_custom_call.1} parent=39 // loop_footer_branch
                %625 = sbr.rel target = $region42
              $region47: #{tpu_custom_call.1} parent=39 // loop_exit
                _
            $region40: #{tpu_custom_call.1} parent=31 // pred_fallthru
              _
          $region32: #{tpu_custom_call.1} parent=27 // pred_fallthru
            _
          %1573 = vnop
        $region28: #{tpu_custom_call.1} parent=23 // pred_fallthru
          _
      $region24: #{tpu_custom_call.1} parent=5 // pred_fallthru
        _
      %p1574 = scmp.le.s32.totalorder 2, %s7
      // Predicated region
      $region63: #{tpu_custom_call.1} parent=5 // pred_check
        %p1575 = pneg %p1574
      $region64: #{tpu_custom_call.1} parent=5 // pred_check_branch
        %1577 = sbr.rel (%p1575) target = $region66
      $region65: #{tpu_custom_call.1} parent=5 // pred_region
        %s1578 = ssub.s32 %s7, 2
        // Predicated region
        $region67: #{tpu_custom_call.1} parent=65 // pred_check
          %p1579 = pneg %p78
        $region68: #{tpu_custom_call.1} parent=65 // pred_check_branch
          %1581 = sbr.rel (%p1579) target = $region70
        $region69: #{tpu_custom_call.1} parent=65 // pred_region
          %s1582 = sand.u32 %s63, 1
          %s1583 = sand.u32 %s63, 1
          %s1584 = smul.addr %s1583, 1856
          %s1585 = scalar_lea.vmem [#allocation2], %s1584
        $region70: #{tpu_custom_call.1} parent=65 // pred_fallthru
          _
      $region66: #{tpu_custom_call.1} parent=5 // pred_fallthru
        _
    $region6: #{tpu_custom_call.1} parent=1 // loop_footer
      %s11 = sadd.s32 1, %s7
    $region7: #{tpu_custom_call.1} parent=1 // loop_footer_branch
      %6 = sbr.rel target = $region3
    $region8: #{tpu_custom_call.1} parent=1 // loop_exit
      _

</llo_original>
